<compile_context>
chip_gen: v7x
topology: tpu7x:2x2x1
jax: 0.10.0
libtpu: 0.0.40
codegen_flags: <defaults>
</compile_context>

<pallas_src>
import numpy as np
import jax
import jax.numpy as jnp
from jax.experimental import pallas as pl
from jax.experimental.pallas import tpu as pltpu

IGNORE_INDEX = -100


# --------------------------- Pallas kernels ---------------------------------

def _fused_graph_kernel(a_ref, x_ref, nm_ref, seg_ref,
                        w1_ref, b1_ref, w2_ref, b2_ref,
                        pw1_ref, pb1_ref, pw2_ref, pb2_ref, out_ref):
    # One grid step == one graph (claim or doc).
    # a:   (N, N)   bf16 row-normalized adjacency (with self loops)
    # x:   (N, Fin) bf16 node features
    # nm:  (N, 1)   f32  node-valid mask (1 real node, 0 padding)
    # seg: (B, N)   bf16 segment-mean matrix (1/count_b where batch[n]==b)
    a = a_ref[0]
    x = x_ref[0]
    nm = nm_ref[0]
    seg = seg_ref[0]

    # ---- 2-layer GCN-style encoder (stand-in for load_gnn_model[...]) ----
    # TODO(synk): exact GAT/GT architecture with edge_attr is external to this module.
    ax = jnp.dot(a, x, preferred_element_type=jnp.float32)                       # (N, Fin) f32
    h1 = jnp.maximum(
        jnp.dot(ax.astype(jnp.bfloat16), w1_ref[...],
                preferred_element_type=jnp.float32) + b1_ref[...], 0.0)
    h1 = h1 * nm                          # zero padded node rows (robust if b1 != 0)
    ah = jnp.dot(a, h1.astype(jnp.bfloat16), preferred_element_type=jnp.float32)
    h2 = jnp.dot(ah.astype(jnp.bfloat16), w2_ref[...],
                 preferred_element_type=jnp.float32) + b2_ref[...]               # (N, H)

    # ---- scatter(..., reduce='mean') pooling -> (B, H), kept in registers/VMEM ----
    pooled = jnp.dot(seg, h2.astype(jnp.bfloat16), preferred_element_type=jnp.float32)

    # ---- projector: Linear(H, 2048) -> Sigmoid -> Linear(2048, E) ----
    p1 = jnp.dot(pooled.astype(jnp.bfloat16), pw1_ref[...],
                 preferred_element_type=jnp.float32) + pb1_ref[...]
    p1 = jax.nn.sigmoid(p1)               # elementwise stays f32 (no bf16 EUP on v5e)
    out = jnp.dot(p1.astype(jnp.bfloat16), pw2_ref[...],
                  preferred_element_type=jnp.float32) + pb2_ref[...]             # (B, E)
    out_ref[0] = out.astype(out_ref.dtype)


def encode_and_project(a_stack, x_stack, node_mask, seg_stack,
                       gnn_w1, gnn_b1, gnn_w2, gnn_b2,
                       proj_w1, proj_b1, proj_w2, proj_b2):
    """Fused: GNN encode + scatter-mean pool + projector, for a stack of G graphs."""
    G, N, _ = a_stack.shape
    Fin = x_stack.shape[-1]
    B = seg_stack.shape[1]
    H = gnn_w2.shape[1]
    P = proj_w1.shape[1]
    E = proj_w2.shape[1]

    def full(shape):
        shape = tuple(int(s) for s in shape)
        return pl.BlockSpec(shape, lambda g, _s=shape: (0,) * len(_s))

    def per_graph(shape):
        shape = tuple(int(s) for s in shape)
        return pl.BlockSpec((1,) + shape, lambda g, _s=shape: (g,) + (0,) * len(_s))

    flops = 2 * G * (N * N * Fin + N * Fin * H + N * N * H + N * H * H
                     + B * N * H + B * H * P + B * P * E)
    inputs = (a_stack, x_stack, node_mask, seg_stack, gnn_w1, gnn_b1, gnn_w2, gnn_b2,
              proj_w1, proj_b1, proj_w2, proj_b2)
    bytes_accessed = sum(int(np.prod(t.shape)) * t.dtype.itemsize for t in inputs)
    bytes_accessed += G * B * E * 4

    return pl.pallas_call(
        _fused_graph_kernel,
        out_shape=jax.ShapeDtypeStruct((G, B, E), jnp.float32),
        grid=(G,),
        in_specs=[per_graph((N, N)), per_graph((N, Fin)), per_graph((N, 1)),
                  per_graph((B, N)),
                  full(gnn_w1.shape), full(gnn_b1.shape),
                  full(gnn_w2.shape), full(gnn_b2.shape),
                  full(proj_w1.shape), full(proj_b1.shape),
                  full(proj_w2.shape), full(proj_b2.shape)],
        out_specs=per_graph((B, E)),
        compiler_params=pltpu.CompilerParams(
            dimension_semantics=("parallel",),       # v7x: shard the 2 graphs over 2 TCs
            vmem_limit_bytes=64 << 20),
        cost_estimate=pl.CostEstimate(flops=int(flops),
                                      transcendentals=int(G * B * P),
                                      bytes_accessed=int(bytes_accessed)),
    )(*inputs)


def _pad_fill_kernel(mask_ref, content_ref, pad_ref, out_ref):
    # out[b,t,:] = content[b,t,:] where attention_mask[b,t] != 0 else pad_embed
    # (mirrors torch.cat([pad_embeds.repeat(pad_length, 1), inputs_embeds]))
    B, L, E = content_ref.shape
    keep = jnp.broadcast_to((mask_ref[...] != 0)[:, :, None], (B, L, E))
    pad_b = jnp.broadcast_to(pad_ref[...], (B, L, E))
    out_ref[...] = jnp.where(keep, content_ref[...], pad_b)


def pad_fill(attention_mask, content, pad_embed_11e):
    vmem = pl.BlockSpec(memory_space=pltpu.MemorySpace.VMEM)
    return pl.pallas_call(
        _pad_fill_kernel,
        out_shape=jax.ShapeDtypeStruct(content.shape, content.dtype),
        in_specs=[vmem] * 3,
        out_specs=vmem,
    )(attention_mask, content, pad_embed_11e)


# ------------------------------- glue ---------------------------------------

if __name__ == "__main__":
    key = jax.random.PRNGKey(0)
    keys = jax.random.split(key, 16)

    # Small config consistent with GraphLLM.__init__
    batch_size = 2
    gnn_in_dim = 16
    gnn_hidden_dim = 32
    proj_hidden = 2048           # hard-coded in the module's projector
    embed_dim = 64               # word_embedding.weight.shape[1]
    vocab_size = 128
    max_txt_len = 8
    max_new_tokens = 4
    n_pad_nodes = 16             # padded node count per batched graph

    # ---- deterministic parameters (matmul weights in bf16, biases in f32) ----
    gnn_w1 = (jax.random.normal(keys[0], (gnn_in_dim, gnn_hidden_dim), jnp.float32)
              * 0.1).astype(jnp.bfloat16)
    gnn_b1 = jnp.zeros((1, gnn_hidden_dim), jnp.float32)
    gnn_w2 = (jax.random.normal(keys[1], (gnn_hidden_dim, gnn_hidden_dim), jnp.float32)
              * 0.1).astype(jnp.bfloat16)
    gnn_b2 = jnp.zeros((1, gnn_hidden_dim), jnp.float32)

    proj_w1 = (jax.random.normal(keys[2], (gnn_hidden_dim, proj_hidden), jnp.float32)
               * 0.05).astype(jnp.bfloat16)
    proj_b1 = jnp.zeros((1, proj_hidden), jnp.float32)
    proj_w2 = (jax.random.normal(keys[3], (proj_hidden, embed_dim), jnp.float32)
               * 0.05).astype(jnp.bfloat16)
    proj_b2 = jnp.zeros((1, embed_dim), jnp.float32)

    word_embedding = jax.random.normal(keys[4], (vocab_size, embed_dim), jnp.float32) * 0.02
    pad_token_id = 0

    # ---- synthetic batched graphs (claim_kg, doc_kg) ----
    def make_graph(key_x, nodes_per_graph, edges, n_pad):
        n_real = sum(nodes_per_graph)
        x = jax.random.normal(key_x, (n_pad, gnn_in_dim), jnp.float32)
        x = x.at[n_real:].set(0.0)
        batch = np.full((n_pad,), -1, dtype=np.int32)
        off = 0
        for g, n in enumerate(nodes_per_graph):
            batch[off:off + n] = g
            off += n
        A = np.zeros((n_pad, n_pad), dtype=np.float32)
        for (s, d) in edges:
            A[s, d] = 1.0
            A[d, s] = 1.0
        for i in range(n_real):
            A[i, i] = 1.0
        deg = A.sum(axis=1, keepdims=True)
        deg[deg == 0] = 1.0
        A_norm = A / deg
        seg = np.zeros((batch_size, n_pad), dtype=np.float32)
        for i in range(n_pad):
            if batch[i] >= 0:
                seg[batch[i], i] = 1.0
        counts = seg.sum(axis=1, keepdims=True)
        counts[counts == 0] = 1.0
        seg_norm = seg / counts
        node_mask = (batch >= 0).astype(np.float32).reshape(n_pad, 1)
        return x, jnp.asarray(A_norm), jnp.asarray(seg_norm), jnp.asarray(node_mask)

    claim_edges = [(0, 1), (1, 2), (2, 3), (3, 4), (5, 6), (6, 7), (7, 8), (8, 9)]
    doc_edges = [(0, 1), (0, 2), (1, 3), (2, 4), (4, 5),
                 (6, 7), (7, 8), (8, 9), (9, 10), (10, 11)]
    claim_x, claim_A, claim_seg, claim_nm = make_graph(keys[5], [5, 5], claim_edges, n_pad_nodes)
    doc_x, doc_A, doc_seg, doc_nm = make_graph(keys[6], [6, 6], doc_edges, n_pad_nodes)

    # Stack claim + doc along a leading "graph" axis -> one fused kernel launch.
    a_stack = jnp.stack([claim_A, doc_A]).astype(jnp.bfloat16)        # (2, N, N)
    x_stack = jnp.stack([claim_x, doc_x]).astype(jnp.bfloat16)        # (2, N, Fin)
    nm_stack = jnp.stack([claim_nm, doc_nm]).astype(jnp.float32)      # (2, N, 1)
    seg_stack = jnp.stack([claim_seg, doc_seg]).astype(jnp.bfloat16)  # (2, B, N)

    # ---- encode_graphs + projector, fused (Pallas) ----
    proj_out = encode_and_project(a_stack, x_stack, nm_stack, seg_stack,
                                  gnn_w1, gnn_b1, gnn_w2, gnn_b2,
                                  proj_w1, proj_b1, proj_w2, proj_b2)  # (2, B, E) f32
    claim_embeds, doc_embeds = proj_out[0], proj_out[1]

    # ---- tokenizer stand-in: deterministic token ids ----
    bos_ids = [1, 2, 3, 4]        # '<s>[INST]'
    eos_ids = [2]                 # '</s>'
    eos_user_ids = [5, 6]         # '[/INST]'
    text_ids = [
        [int(t) for t in np.asarray(jax.random.randint(keys[7], (6,), 7, vocab_size))],
        [int(t) for t in np.asarray(jax.random.randint(keys[8], (10,), 7, vocab_size))],
    ]
    label_ids = [
        [int(t) for t in np.asarray(jax.random.randint(keys[9], (3,), 7, vocab_size))],
        [int(t) for t in np.asarray(jax.random.randint(keys[10], (2,), 7, vocab_size))],
    ]

    # ---- vectorized prompt assembly (host builds index/one-hot tables once) ----
    n_graph_tokens = 2  # claim slot + doc slot
    seqs, labs, lengths = [], [], []
    for i in range(batch_size):
        lab = label_ids[i][:max_new_tokens] + eos_ids
        inp = text_ids[i][:max_txt_len] + eos_user_ids + lab
        seqs.append(inp)
        labs.append(lab)
        lengths.append(len(bos_ids) + n_graph_tokens + len(inp))
    max_length = max(lengths)

    token_ids_np = np.full((batch_size, max_length), pad_token_id, np.int32)
    mask_np = np.zeros((batch_size, max_length), np.int32)
    labels_np = np.full((batch_size, max_length), IGNORE_INDEX, np.int32)
    claim_oh_np = np.zeros((batch_size, max_length), np.float32)
    doc_oh_np = np.zeros((batch_size, max_length), np.float32)
    for i in range(batch_size):
        pad_len = max_length - lengths[i]
        pos = pad_len
        token_ids_np[i, pos:pos + len(bos_ids)] = bos_ids
        pos += len(bos_ids)
        claim_oh_np[i, pos] = 1.0
        pos += 1
        doc_oh_np[i, pos] = 1.0
        pos += 1
        token_ids_np[i, pos:pos + len(seqs[i])] = seqs[i]
        mask_np[i, pad_len:] = 1
        labels_np[i, max_length - len(labs[i]):] = labs[i]

    token_ids = jnp.asarray(token_ids_np)                 # (B, L)
    attention_mask = jnp.asarray(mask_np)                 # (B, L) int32
    label_input_ids = jnp.asarray(labels_np)              # (B, L)
    claim_oh = jnp.asarray(claim_oh_np)                   # (B, L)
    doc_oh = jnp.asarray(doc_oh_np)                       # (B, L)

    # Single embedding gather + one-hot mix-in of the projected graph embeddings
    # (replaces the per-example python loop / .at[].set calls).
    token_embeds = jnp.take(word_embedding, token_ids, axis=0)            # (B, L, E)
    keep = (1.0 - claim_oh - doc_oh)[:, :, None]
    content = (token_embeds * keep
               + claim_oh[:, :, None] * claim_embeds[:, None, :]
               + doc_oh[:, :, None] * doc_embeds[:, None, :])             # (B, L, E)

    pad_embeds = word_embedding[pad_token_id][None, :]                    # (1, E)

    # ---- left padding with pad_embeds (Pallas select; mask + pad broadcast in-kernel) ----
    inputs_embeds = pad_fill(attention_mask, content, pad_embeds[None])   # (B, L, E)

    # TODO(synk): the frozen LLaMA (AutoModelForCausalLM) forward that produces
    # outputs.loss is external; the script stops at the assembled
    # (inputs_embeds, attention_mask, label_input_ids) that would feed self.model(...).

    jax.block_until_ready((inputs_embeds, attention_mask, label_input_ids,
                           claim_embeds, doc_embeds))
    print("KERNEL_OK")
</pallas_src>

<mosaic_0001>
module attributes {stable_mosaic.version = 11 : i64} {
  func.func @_fused_graph_kernel(%arg0: i32, %arg1: memref<1x16x16xbf16, #tpu.memory_space<vmem>>, %arg2: memref<1x16x16xbf16, #tpu.memory_space<vmem>>, %arg3: memref<1x16x1xf32, #tpu.memory_space<vmem>>, %arg4: memref<1x2x16xbf16, #tpu.memory_space<vmem>>, %arg5: memref<16x32xbf16, #tpu.memory_space<vmem>>, %arg6: memref<1x32xf32, #tpu.memory_space<vmem>>, %arg7: memref<32x32xbf16, #tpu.memory_space<vmem>>, %arg8: memref<1x32xf32, #tpu.memory_space<vmem>>, %arg9: memref<32x2048xbf16, #tpu.memory_space<vmem>>, %arg10: memref<1x2048xf32, #tpu.memory_space<vmem>>, %arg11: memref<2048x64xbf16, #tpu.memory_space<vmem>>, %arg12: memref<1x64xf32, #tpu.memory_space<vmem>>, %arg13: memref<1x2x64xf32, #tpu.memory_space<vmem>>) attributes {dimension_semantics = [#tpu.dimension_semantics<parallel>], iteration_bounds = array<i64: 2>, scalar_prefetch = 0 : i64, scratch_operands = 0 : i64, tpu.core_type = #tpu.core_type<tc>, window_params = [{transform_indices = @transform_0, window_bounds = array<i64: 1, 16, 16>}, {transform_indices = @transform_1, window_bounds = array<i64: 1, 16, 16>}, {transform_indices = @transform_2, window_bounds = array<i64: 1, 16, 1>}, {transform_indices = @transform_3, window_bounds = array<i64: 1, 2, 16>}, {pipeline_mode = #tpu.pipeline_mode<synchronous>, transform_indices = @transform_4, window_bounds = array<i64: 16, 32>}, {pipeline_mode = #tpu.pipeline_mode<synchronous>, transform_indices = @transform_5, window_bounds = array<i64: 1, 32>}, {pipeline_mode = #tpu.pipeline_mode<synchronous>, transform_indices = @transform_6, window_bounds = array<i64: 32, 32>}, {pipeline_mode = #tpu.pipeline_mode<synchronous>, transform_indices = @transform_7, window_bounds = array<i64: 1, 32>}, {pipeline_mode = #tpu.pipeline_mode<synchronous>, transform_indices = @transform_8, window_bounds = array<i64: 32, 2048>}, {pipeline_mode = #tpu.pipeline_mode<synchronous>, transform_indices = @transform_9, window_bounds = array<i64: 1, 2048>}, {pipeline_mode = #tpu.pipeline_mode<synchronous>, transform_indices = @transform_10, window_bounds = array<i64: 2048, 64>}, {pipeline_mode = #tpu.pipeline_mode<synchronous>, transform_indices = @transform_11, window_bounds = array<i64: 1, 64>}, {transform_indices = @transform_12, window_bounds = array<i64: 1, 2, 64>}]} {
    %c0 = arith.constant 0 : index
    %c0_0 = arith.constant 0 : index
    %c0_1 = arith.constant 0 : index
    %0 = vector.load %arg1[%c0, %c0_0, %c0_1] : memref<1x16x16xbf16, #tpu.memory_space<vmem>>, vector<1x16x16xbf16>
    %1 = vector.shape_cast %0 : vector<1x16x16xbf16> to vector<16x16xbf16>
    %c0_2 = arith.constant 0 : index
    %c0_3 = arith.constant 0 : index
    %c0_4 = arith.constant 0 : index
    %2 = vector.load %arg2[%c0_2, %c0_3, %c0_4] : memref<1x16x16xbf16, #tpu.memory_space<vmem>>, vector<1x16x16xbf16>
    %3 = vector.shape_cast %2 : vector<1x16x16xbf16> to vector<16x16xbf16>
    %c0_5 = arith.constant 0 : index
    %c0_6 = arith.constant 0 : index
    %c0_7 = arith.constant 0 : index
    %4 = vector.load %arg3[%c0_5, %c0_6, %c0_7] : memref<1x16x1xf32, #tpu.memory_space<vmem>>, vector<1x16x1xf32>
    %5 = vector.shape_cast %4 : vector<1x16x1xf32> to vector<16x1xf32>
    %c0_8 = arith.constant 0 : index
    %c0_9 = arith.constant 0 : index
    %c0_10 = arith.constant 0 : index
    %6 = vector.load %arg4[%c0_8, %c0_9, %c0_10] : memref<1x2x16xbf16, #tpu.memory_space<vmem>>, vector<1x2x16xbf16>
    %7 = vector.shape_cast %6 : vector<1x2x16xbf16> to vector<2x16xbf16>
    %cst = arith.constant dense<0.000000e+00> : vector<16x16xf32>
    %8 = tpu.matmul %1, %3, %cst {dimension_numbers = #tpu.dot_dimension_numbers<[1], [0], [0], [1], [0, 0, 1, 1], [], []>} : vector<16x16xbf16>, vector<16x16xbf16>, vector<16x16xf32> -> vector<16x16xf32>
    %9 = arith.truncf %8 : vector<16x16xf32> to vector<16x16xbf16>
    %c0_11 = arith.constant 0 : index
    %c0_12 = arith.constant 0 : index
    %10 = vector.load %arg5[%c0_11, %c0_12] : memref<16x32xbf16, #tpu.memory_space<vmem>>, vector<16x32xbf16>
    %cst_13 = arith.constant dense<0.000000e+00> : vector<16x32xf32>
    %11 = tpu.matmul %9, %10, %cst_13 {dimension_numbers = #tpu.dot_dimension_numbers<[1], [0], [0], [1], [0, 0, 1, 1], [], []>} : vector<16x16xbf16>, vector<16x32xbf16>, vector<16x32xf32> -> vector<16x32xf32>
    %c0_14 = arith.constant 0 : index
    %c0_15 = arith.constant 0 : index
    %12 = vector.load %arg6[%c0_14, %c0_15] : memref<1x32xf32, #tpu.memory_space<vmem>>, vector<1x32xf32>
    %13 = vector.broadcast %12 : vector<1x32xf32> to vector<16x32xf32>
    %14 = arith.addf %11, %13 : vector<16x32xf32>
    %cst_16 = arith.constant 0.000000e+00 : f32
    %15 = vector.broadcast %cst_16 : f32 to vector<16x32xf32>
    %16 = arith.maximumf %14, %15 : vector<16x32xf32>
    %17 = vector.broadcast %5 : vector<16x1xf32> to vector<16x32xf32>
    %18 = arith.mulf %16, %17 : vector<16x32xf32>
    %19 = arith.truncf %18 : vector<16x32xf32> to vector<16x32xbf16>
    %cst_17 = arith.constant dense<0.000000e+00> : vector<16x32xf32>
    %20 = tpu.matmul %1, %19, %cst_17 {dimension_numbers = #tpu.dot_dimension_numbers<[1], [0], [0], [1], [0, 0, 1, 1], [], []>} : vector<16x16xbf16>, vector<16x32xbf16>, vector<16x32xf32> -> vector<16x32xf32>
    %21 = arith.truncf %20 : vector<16x32xf32> to vector<16x32xbf16>
    %c0_18 = arith.constant 0 : index
    %c0_19 = arith.constant 0 : index
    %22 = vector.load %arg7[%c0_18, %c0_19] : memref<32x32xbf16, #tpu.memory_space<vmem>>, vector<32x32xbf16>
    %cst_20 = arith.constant dense<0.000000e+00> : vector<16x32xf32>
    %23 = tpu.matmul %21, %22, %cst_20 {dimension_numbers = #tpu.dot_dimension_numbers<[1], [0], [0], [1], [0, 0, 1, 1], [], []>} : vector<16x32xbf16>, vector<32x32xbf16>, vector<16x32xf32> -> vector<16x32xf32>
    %c0_21 = arith.constant 0 : index
    %c0_22 = arith.constant 0 : index
    %24 = vector.load %arg8[%c0_21, %c0_22] : memref<1x32xf32, #tpu.memory_space<vmem>>, vector<1x32xf32>
    %25 = vector.broadcast %24 : vector<1x32xf32> to vector<16x32xf32>
    %26 = arith.addf %23, %25 : vector<16x32xf32>
    %27 = arith.truncf %26 : vector<16x32xf32> to vector<16x32xbf16>
    %cst_23 = arith.constant dense<0.000000e+00> : vector<2x32xf32>
    %28 = tpu.matmul %7, %27, %cst_23 {dimension_numbers = #tpu.dot_dimension_numbers<[1], [0], [0], [1], [0, 0, 1, 1], [], []>} : vector<2x16xbf16>, vector<16x32xbf16>, vector<2x32xf32> -> vector<2x32xf32>
    %29 = arith.truncf %28 : vector<2x32xf32> to vector<2x32xbf16>
    %c0_24 = arith.constant 0 : index
    %c0_25 = arith.constant 0 : index
    %30 = vector.load %arg9[%c0_24, %c0_25] : memref<32x2048xbf16, #tpu.memory_space<vmem>>, vector<32x2048xbf16>
    %cst_26 = arith.constant dense<0.000000e+00> : vector<2x2048xf32>
    %31 = tpu.matmul %29, %30, %cst_26 {dimension_numbers = #tpu.dot_dimension_numbers<[1], [0], [0], [1], [0, 0, 1, 1], [], []>} : vector<2x32xbf16>, vector<32x2048xbf16>, vector<2x2048xf32> -> vector<2x2048xf32>
    %c0_27 = arith.constant 0 : index
    %c0_28 = arith.constant 0 : index
    %32 = vector.load %arg10[%c0_27, %c0_28] : memref<1x2048xf32, #tpu.memory_space<vmem>>, vector<1x2048xf32>
    %33 = vector.broadcast %32 : vector<1x2048xf32> to vector<2x2048xf32>
    %34 = arith.addf %31, %33 : vector<2x2048xf32>
    %35 = arith.negf %34 : vector<2x2048xf32>
    %36 = math.exp %35 : vector<2x2048xf32>
    %cst_29 = arith.constant 1.000000e+00 : f32
    %37 = vector.broadcast %cst_29 : f32 to vector<2x2048xf32>
    %38 = arith.addf %37, %36 : vector<2x2048xf32>
    %39 = arith.divf %37, %38 : vector<2x2048xf32>
    %40 = arith.truncf %39 : vector<2x2048xf32> to vector<2x2048xbf16>
    %c0_30 = arith.constant 0 : index
    %c0_31 = arith.constant 0 : index
    %41 = vector.load %arg11[%c0_30, %c0_31] : memref<2048x64xbf16, #tpu.memory_space<vmem>>, vector<2048x64xbf16>
    %cst_32 = arith.constant dense<0.000000e+00> : vector<2x64xf32>
    %42 = tpu.matmul %40, %41, %cst_32 {dimension_numbers = #tpu.dot_dimension_numbers<[1], [0], [0], [1], [0, 0, 1, 1], [], []>} : vector<2x2048xbf16>, vector<2048x64xbf16>, vector<2x64xf32> -> vector<2x64xf32>
    %c0_33 = arith.constant 0 : index
    %c0_34 = arith.constant 0 : index
    %43 = vector.load %arg12[%c0_33, %c0_34] : memref<1x64xf32, #tpu.memory_space<vmem>>, vector<1x64xf32>
    %44 = vector.broadcast %43 : vector<1x64xf32> to vector<2x64xf32>
    %45 = arith.addf %42, %44 : vector<2x64xf32>
    %c0_35 = arith.constant 0 : index
    %c0_36 = arith.constant 0 : index
    %c0_37 = arith.constant 0 : index
    %46 = vector.load %arg13[%c0_35, %c0_36, %c0_37] : memref<1x2x64xf32, #tpu.memory_space<vmem>>, vector<1x2x64xf32>
    %47 = vector.shape_cast %46 : vector<1x2x64xf32> to vector<2x64xf32>
    %48 = vector.shape_cast %45 : vector<2x64xf32> to vector<1x2x64xf32>
    tpu.vector_store %arg13[%c0_35, %c0_36, %c0_37], %48 {strides = array<i32>} : memref<1x2x64xf32, #tpu.memory_space<vmem>>, vector<1x2x64xf32>,
    return
  }
  func.func @transform_0(%arg0: i32) -> (i32, i32, i32) {
    %c0_i32 = arith.constant 0 : i32
    %c0_i32_0 = arith.constant 0 : i32
    %c0_i32_1 = arith.constant 0 : i32
    return %arg0, %c0_i32, %c0_i32_0 : i32, i32, i32
  }
  func.func @transform_1(%arg0: i32) -> (i32, i32, i32) {
    %c0_i32 = arith.constant 0 : i32
    %c0_i32_0 = arith.constant 0 : i32
    %c0_i32_1 = arith.constant 0 : i32
    return %arg0, %c0_i32, %c0_i32_0 : i32, i32, i32
  }
  func.func @transform_2(%arg0: i32) -> (i32, i32, i32) {
    %c0_i32 = arith.constant 0 : i32
    %c0_i32_0 = arith.constant 0 : i32
    %c0_i32_1 = arith.constant 0 : i32
    return %arg0, %c0_i32, %c0_i32_0 : i32, i32, i32
  }
  func.func @transform_3(%arg0: i32) -> (i32, i32, i32) {
    %c0_i32 = arith.constant 0 : i32
    %c0_i32_0 = arith.constant 0 : i32
    %c0_i32_1 = arith.constant 0 : i32
    return %arg0, %c0_i32, %c0_i32_0 : i32, i32, i32
  }
  func.func @transform_4(%arg0: i32) -> (i32, i32) {
    %c0_i32 = arith.constant 0 : i32
    %c0_i32_0 = arith.constant 0 : i32
    %c0_i32_1 = arith.constant 0 : i32
    return %c0_i32, %c0_i32_0 : i32, i32
  }
  func.func @transform_5(%arg0: i32) -> (i32, i32) {
    %c0_i32 = arith.constant 0 : i32
    %c0_i32_0 = arith.constant 0 : i32
    %c0_i32_1 = arith.constant 0 : i32
    return %c0_i32, %c0_i32_0 : i32, i32
  }
  func.func @transform_6(%arg0: i32) -> (i32, i32) {
    %c0_i32 = arith.constant 0 : i32
    %c0_i32_0 = arith.constant 0 : i32
    %c0_i32_1 = arith.constant 0 : i32
    return %c0_i32, %c0_i32_0 : i32, i32
  }
  func.func @transform_7(%arg0: i32) -> (i32, i32) {
    %c0_i32 = arith.constant 0 : i32
    %c0_i32_0 = arith.constant 0 : i32
    %c0_i32_1 = arith.constant 0 : i32
    return %c0_i32, %c0_i32_0 : i32, i32
  }
  func.func @transform_8(%arg0: i32) -> (i32, i32) {
    %c0_i32 = arith.constant 0 : i32
    %c0_i32_0 = arith.constant 0 : i32
    %c0_i32_1 = arith.constant 0 : i32
    return %c0_i32, %c0_i32_0 : i32, i32
  }
  func.func @transform_9(%arg0: i32) -> (i32, i32) {
    %c0_i32 = arith.constant 0 : i32
    %c0_i32_0 = arith.constant 0 : i32
    %c0_i32_1 = arith.constant 0 : i32
    return %c0_i32, %c0_i32_0 : i32, i32
  }
  func.func @transform_10(%arg0: i32) -> (i32, i32) {
    %c0_i32 = arith.constant 0 : i32
    %c0_i32_0 = arith.constant 0 : i32
    %c0_i32_1 = arith.constant 0 : i32
    return %c0_i32, %c0_i32_0 : i32, i32
  }
  func.func @transform_11(%arg0: i32) -> (i32, i32) {
    %c0_i32 = arith.constant 0 : i32
    %c0_i32_0 = arith.constant 0 : i32
    %c0_i32_1 = arith.constant 0 : i32
    return %c0_i32, %c0_i32_0 : i32, i32
  }
  func.func @transform_12(%arg0: i32) -> (i32, i32, i32) {
    %c0_i32 = arith.constant 0 : i32
    %c0_i32_0 = arith.constant 0 : i32
    %c0_i32_1 = arith.constant 0 : i32
    return %arg0, %c0_i32, %c0_i32_0 : i32, i32, i32
  }
}

</mosaic_0001>

<llo_original>
// kernel: tpu_custom_call.1
$region0: #{tpu_custom_call.1}
  #allocation0 [shape = 'u32[]', space=smem, size = 0x4, offset = 0x4, fixed_abs, tag = 'smem constant byte address 0x4 - core index']
  #allocation1 [shape = 'u32[144,128]{1,0:T(1,128)}', space=vmem, size = 0x12000, scoped, tag = 'internal scratch']
  %s0 = inlined_call_operand.hbm [shape: bf16[2,16,16], index: 0, kind: input, shape index: {}]
  %s1 = inlined_call_operand.hbm [shape: bf16[2,16,16], index: 1, kind: input, shape index: {}]
  %s2 = inlined_call_operand.hbm [shape: f32[2,16,1], index: 2, kind: input, shape index: {}]
  %s3 = inlined_call_operand.hbm [shape: bf16[2,2,16], index: 3, kind: input, shape index: {}]
  %s4 = inlined_call_operand.hbm [shape: bf16[16,32], index: 4, kind: input, shape index: {}]
  %s5 = inlined_call_operand.hbm [shape: f32[1,32], index: 5, kind: input, shape index: {}]
  %s6 = inlined_call_operand.hbm [shape: bf16[32,32], index: 6, kind: input, shape index: {}]
  %s7 = inlined_call_operand.hbm [shape: f32[1,32], index: 7, kind: input, shape index: {}]
  %s8 = inlined_call_operand.hbm [shape: bf16[32,2048], index: 8, kind: input, shape index: {}]
  %s9 = inlined_call_operand.hbm [shape: f32[1,2048], index: 9, kind: input, shape index: {}]
  %s10 = inlined_call_operand.hbm [shape: bf16[2048,64], index: 10, kind: input, shape index: {}]
  %s11 = inlined_call_operand.hbm [shape: f32[1,64], index: 11, kind: input, shape index: {}]
  %s12 = inlined_call_operand.hbm [shape: f32[2,2,64], index: 12, kind: output, shape index: {}]
  %s13 = sld [smem:[#allocation0]]
  $region129: #{tpu_custom_call.1} parent=0
    _
  %s15 = ssub.s32 1, %s13
  %s16 = scalar_select 0, %s15, %s13
  $region1: #{tpu_custom_call.1} parent=0
    #allocation2 [shape = 'u8[8192]{0}', space=vmem, size = 0x2000, scoped, tag = 'input window, operand 0']
    #allocation3 [shape = 's32[2]{0}', space=sflag, size = 0x8, scoped, tag = 'scoped memory for tpu_custom_call.1']
    #allocation4 [shape = 's32[2]{0}', space=sflag, size = 0x8, scoped, tag = 'scoped memory for tpu_custom_call.1']
    #allocation5 [shape = 'u8[8192]{0}', space=vmem, size = 0x2000, scoped, tag = 'input window, operand 1']
    #allocation6 [shape = 's32[2]{0}', space=sflag, size = 0x8, scoped, tag = 'scoped memory for tpu_custom_call.1']
    #allocation7 [shape = 'u8[16384]{0}', space=vmem, size = 0x4000, scoped, tag = 'input window, operand 2']
    #allocation8 [shape = 'u8[1024]{0}', space=vmem, size = 0x400, scoped, tag = 'input window, operand 3']
    #allocation9 [shape = 's32[2]{0}', space=sflag, size = 0x8, scoped, tag = 'scoped memory for tpu_custom_call.1']
    #allocation10 [shape = 'u8[4096]{0}', space=vmem, size = 0x1000, scoped, tag = 'input window, operand 4, single buffered']
    #allocation11 [shape = 'u8[512]{0}', space=vmem, size = 0x400, scoped, tag = 'input window, operand 5, single buffered']
    #allocation12 [shape = 's32[1]{0}', space=sflag, size = 0x4, scoped, tag = 'scoped memory for tpu_custom_call.1']
    #allocation13 [shape = 'u8[8192]{0}', space=vmem, size = 0x2000, scoped, tag = 'input window, operand 6, single buffered']
    #allocation14 [shape = 'u8[512]{0}', space=vmem, size = 0x400, scoped, tag = 'input window, operand 7, single buffered']
    #allocation15 [shape = 's32[1]{0}', space=sflag, size = 0x4, scoped, tag = 'scoped memory for tpu_custom_call.1']
    #allocation16 [shape = 'u8[131072]{0}', space=vmem, size = 0x20000, scoped, tag = 'input window, operand 8, single buffered']
    #allocation17 [shape = 'u8[8192]{0}', space=vmem, size = 0x2000, scoped, tag = 'input window, operand 9, single buffered']
    #allocation18 [shape = 's32[1]{0}', space=sflag, size = 0x4, scoped, tag = 'scoped memory for tpu_custom_call.1']
    #allocation19 [shape = 'u8[524288]{0}', space=vmem, size = 0x80000, scoped, tag = 'input window, operand 10, single buffered']
    #allocation20 [shape = 'u8[512]{0}', space=vmem, size = 0x400, scoped, tag = 'input window, operand 11, single buffered']
    #allocation21 [shape = 's32[1]{0}', space=sflag, size = 0x4, scoped, tag = 'scoped memory for tpu_custom_call.1']
    #allocation22 [shape = 'u8[2048]{0}', space=vmem, size = 0x800, scoped, tag = 'output window, operand 0']
    %17 = vsyncpa [#allocation3], 0
    %s18 = scalar_lea.sflag [#allocation3], 1
    %19 = vsyncpa %s18, 0
    %20 = vsyncpa [#allocation6], 0
    %s21 = scalar_lea.sflag [#allocation6], 1
    %22 = vsyncpa %s21, 0
    %23 = vsyncpa [#allocation9], 0
    %s24 = scalar_lea.sflag [#allocation9], 1
    %25 = vsyncpa %s24, 0
    %26 = vsyncpa [#allocation12], 0
    %27 = vsyncpa [#allocation15], 0
    %28 = vsyncpa [#allocation18], 0
    %29 = vsyncpa [#allocation21], 0
    %30 = vsyncpa [#allocation4], 0
    %s31 = scalar_lea.sflag [#allocation4], 1
    %32 = vsyncpa %s31, 0
    loop: start=0, step=1, limit=4
    $region2: #{tpu_custom_call.1} parent=1 // loop_pre_header
      _
    $region3: #{tpu_custom_call.1} parent=1 // loop_header
      %s34 = sphi 0, %s38
      %p35 = scmp.ge.s32.totalorder %s34, 4
      %s44 = sphi 0, %s46
      %s47 = sphi 0, %s44
      %s48 = sphi 0, %s47
      %s64 = sphi 0, %s48
      %s70 = sphi 0, %s72
      %s73 = sphi 0, %s70
      %s74 = sphi 0, %s73
      %s90 = sphi 0, %s74
      %s96 = sphi 0, %s98
      %s99 = sphi 0, %s96
      %s100 = sphi 0, %s99
      %s116 = sphi 0, %s100
      %s122 = sphi 0, %s124
      %s125 = sphi 0, %s122
      %s126 = sphi 0, %s125
      %s142 = sphi 0, %s126
      %s146 = sphi 0, %s146
      %s148 = sphi 0, %s146
      %s149 = sphi 0, %s148
      %s163 = sphi 0, %s149
      %s167 = sphi 0, %s167
      %s169 = sphi 0, %s167
      %s170 = sphi 0, %s169
      %s184 = sphi 0, %s170
      %s188 = sphi 0, %s188
      %s190 = sphi 0, %s188
      %s191 = sphi 0, %s190
      %s205 = sphi 0, %s191
      %s209 = sphi 0, %s209
      %s211 = sphi 0, %s209
      %s212 = sphi 0, %s211
      %s226 = sphi 0, %s212
      %s230 = sphi 0, %s230
      %s232 = sphi 0, %s230
      %s233 = sphi 0, %s232
      %s247 = sphi 0, %s233
      %s251 = sphi 0, %s251
      %s253 = sphi 0, %s251
      %s254 = sphi 0, %s253
      %s268 = sphi 0, %s254
      %s272 = sphi 0, %s272
      %s274 = sphi 0, %s272
      %s275 = sphi 0, %s274
      %s289 = sphi 0, %s275
      %s293 = sphi 0, %s293
      %s295 = sphi 0, %s293
      %s296 = sphi 0, %s295
      %s310 = sphi 0, %s296
      %s316 = sphi 0, %s318
      %s319 = sphi 0, %s316
      %s320 = sphi 0, %s319
      %s336 = sphi 0, %s320
    $region4: #{tpu_custom_call.1} parent=1 // loop_header_branch
      %37 = sbr.rel (%p35) target = $region8
    $region5: #{tpu_custom_call.1} parent=1 // loop_body
      %s39 = ssub.s32 %s34, 1
      %s40 = ssub.s32 %s34, 2
      %s41 = sadd.s32 %s34, 1
      %s42 = ssub.s32 %s34, %s41
      %p43 = scmp.eq.s32.totalorder %s42, 0
      %s45 = sadd.s32 %s44, 1
      %s46 = scalar_select %p43, %s44, %s45
      %p49 = pneg %p43
      %p50 = scmp.eq.s32.totalorder %s34, 1
      %p51 = por %p49, %p50
      %p52 = scmp.ne.s32.totalorder %s44, %s47
      %p53 = scmp.eq.s32.totalorder %s34, 0
      %p54 = por %p52, %p53
      %p55 = scmp.ne.s32.totalorder %s44, %s47
      %p56 = scmp.eq.s32.totalorder %s39, 1
      %p57 = por %p55, %p56
      %p58 = scmp.ne.s32.totalorder %s47, %s48
      %p59 = scmp.eq.s32.totalorder %s39, 0
      %p60 = por %p58, %p59
      %p61 = scmp.ne.s32.totalorder %s47, %s48
      %p62 = scmp.eq.s32.totalorder %s40, 1
      %p63 = por %p61, %p62
      %p65 = scmp.ne.s32.totalorder %s48, %s64
      %p66 = scmp.eq.s32.totalorder %s40, 0
      %p67 = por %p65, %p66
      %s68 = ssub.s32 %s34, %s41
      %p69 = scmp.eq.s32.totalorder %s68, 0
      %s71 = sadd.s32 %s70, 1
      %s72 = scalar_select %p69, %s70, %s71
      %p75 = pneg %p69
      %p76 = scmp.eq.s32.totalorder %s34, 1
      %p77 = por %p75, %p76
      %p78 = scmp.ne.s32.totalorder %s70, %s73
      %p79 = scmp.eq.s32.totalorder %s34, 0
      %p80 = por %p78, %p79
      %p81 = scmp.ne.s32.totalorder %s70, %s73
      %p82 = scmp.eq.s32.totalorder %s39, 1
      %p83 = por %p81, %p82
      %p84 = scmp.ne.s32.totalorder %s73, %s74
      %p85 = scmp.eq.s32.totalorder %s39, 0
      %p86 = por %p84, %p85
      %p87 = scmp.ne.s32.totalorder %s73, %s74
      %p88 = scmp.eq.s32.totalorder %s40, 1
      %p89 = por %p87, %p88
      %p91 = scmp.ne.s32.totalorder %s74, %s90
      %p92 = scmp.eq.s32.totalorder %s40, 0
      %p93 = por %p91, %p92
      %s94 = ssub.s32 %s34, %s41
      %p95 = scmp.eq.s32.totalorder %s94, 0
      %s97 = sadd.s32 %s96, 1
      %s98 = scalar_select %p95, %s96, %s97
      %p101 = pneg %p95
      %p102 = scmp.eq.s32.totalorder %s34, 1
      %p103 = por %p101, %p102
      %p104 = scmp.ne.s32.totalorder %s96, %s99
      %p105 = scmp.eq.s32.totalorder %s34, 0
      %p106 = por %p104, %p105
      %p107 = scmp.ne.s32.totalorder %s96, %s99
      %p108 = scmp.eq.s32.totalorder %s39, 1
      %p109 = por %p107, %p108
      %p110 = scmp.ne.s32.totalorder %s99, %s100
      %p111 = scmp.eq.s32.totalorder %s39, 0
      %p112 = por %p110, %p111
      %p113 = scmp.ne.s32.totalorder %s99, %s100
      %p114 = scmp.eq.s32.totalorder %s40, 1
      %p115 = por %p113, %p114
      %p117 = scmp.ne.s32.totalorder %s100, %s116
      %p118 = scmp.eq.s32.totalorder %s40, 0
      %p119 = por %p117, %p118
      %s120 = ssub.s32 %s34, %s41
      %p121 = scmp.eq.s32.totalorder %s120, 0
      %s123 = sadd.s32 %s122, 1
      %s124 = scalar_select %p121, %s122, %s123
      %p127 = pneg %p121
      %p128 = scmp.eq.s32.totalorder %s34, 1
      %p129 = por %p127, %p128
      %p130 = scmp.ne.s32.totalorder %s122, %s125
      %p131 = scmp.eq.s32.totalorder %s34, 0
      %p132 = por %p130, %p131
      %p133 = scmp.ne.s32.totalorder %s122, %s125
      %p134 = scmp.eq.s32.totalorder %s39, 1
      %p135 = por %p133, %p134
      %p136 = scmp.ne.s32.totalorder %s125, %s126
      %p137 = scmp.eq.s32.totalorder %s39, 0
      %p138 = por %p136, %p137
      %p139 = scmp.ne.s32.totalorder %s125, %s126
      %p140 = scmp.eq.s32.totalorder %s40, 1
      %p141 = por %p139, %p140
      %p143 = scmp.ne.s32.totalorder %s126, %s142
      %p144 = scmp.eq.s32.totalorder %s40, 0
      %p145 = por %p143, %p144
      %s147 = sadd.s32 %s146, 1
      %p150 = scmp.eq.s32.totalorder %s34, 1
      %p151 = scmp.ne.s32.totalorder %s146, %s148
      %p152 = scmp.eq.s32.totalorder %s34, 0
      %p153 = por %p151, %p152
      %p154 = scmp.ne.s32.totalorder %s146, %s148
      %p155 = scmp.eq.s32.totalorder %s39, 1
      %p156 = por %p154, %p155
      %p157 = scmp.ne.s32.totalorder %s148, %s149
      %p158 = scmp.eq.s32.totalorder %s39, 0
      %p159 = por %p157, %p158
      %p160 = scmp.ne.s32.totalorder %s148, %s149
      %p161 = scmp.eq.s32.totalorder %s40, 1
      %p162 = por %p160, %p161
      %p164 = scmp.ne.s32.totalorder %s149, %s163
      %p165 = scmp.eq.s32.totalorder %s40, 0
      %p166 = por %p164, %p165
      %s168 = sadd.s32 %s167, 1
      %p171 = scmp.eq.s32.totalorder %s34, 1
      %p172 = scmp.ne.s32.totalorder %s167, %s169
      %p173 = scmp.eq.s32.totalorder %s34, 0
      %p174 = por %p172, %p173
      %p175 = scmp.ne.s32.totalorder %s167, %s169
      %p176 = scmp.eq.s32.totalorder %s39, 1
      %p177 = por %p175, %p176
      %p178 = scmp.ne.s32.totalorder %s169, %s170
      %p179 = scmp.eq.s32.totalorder %s39, 0
      %p180 = por %p178, %p179
      %p181 = scmp.ne.s32.totalorder %s169, %s170
      %p182 = scmp.eq.s32.totalorder %s40, 1
      %p183 = por %p181, %p182
      %p185 = scmp.ne.s32.totalorder %s170, %s184
      %p186 = scmp.eq.s32.totalorder %s40, 0
      %p187 = por %p185, %p186
      %s189 = sadd.s32 %s188, 1
      %p192 = scmp.eq.s32.totalorder %s34, 1
      %p193 = scmp.ne.s32.totalorder %s188, %s190
      %p194 = scmp.eq.s32.totalorder %s34, 0
      %p195 = por %p193, %p194
      %p196 = scmp.ne.s32.totalorder %s188, %s190
      %p197 = scmp.eq.s32.totalorder %s39, 1
      %p198 = por %p196, %p197
      %p199 = scmp.ne.s32.totalorder %s190, %s191
      %p200 = scmp.eq.s32.totalorder %s39, 0
      %p201 = por %p199, %p200
      %p202 = scmp.ne.s32.totalorder %s190, %s191
      %p203 = scmp.eq.s32.totalorder %s40, 1
      %p204 = por %p202, %p203
      %p206 = scmp.ne.s32.totalorder %s191, %s205
      %p207 = scmp.eq.s32.totalorder %s40, 0
      %p208 = por %p206, %p207
      %s210 = sadd.s32 %s209, 1
      %p213 = scmp.eq.s32.totalorder %s34, 1
      %p214 = scmp.ne.s32.totalorder %s209, %s211
      %p215 = scmp.eq.s32.totalorder %s34, 0
      %p216 = por %p214, %p215
      %p217 = scmp.ne.s32.totalorder %s209, %s211
      %p218 = scmp.eq.s32.totalorder %s39, 1
      %p219 = por %p217, %p218
      %p220 = scmp.ne.s32.totalorder %s211, %s212
      %p221 = scmp.eq.s32.totalorder %s39, 0
      %p222 = por %p220, %p221
      %p223 = scmp.ne.s32.totalorder %s211, %s212
      %p224 = scmp.eq.s32.totalorder %s40, 1
      %p225 = por %p223, %p224
      %p227 = scmp.ne.s32.totalorder %s212, %s226
      %p228 = scmp.eq.s32.totalorder %s40, 0
      %p229 = por %p227, %p228
      %s231 = sadd.s32 %s230, 1
      %p234 = scmp.eq.s32.totalorder %s34, 1
      %p235 = scmp.ne.s32.totalorder %s230, %s232
      %p236 = scmp.eq.s32.totalorder %s34, 0
      %p237 = por %p235, %p236
      %p238 = scmp.ne.s32.totalorder %s230, %s232
      %p239 = scmp.eq.s32.totalorder %s39, 1
      %p240 = por %p238, %p239
      %p241 = scmp.ne.s32.totalorder %s232, %s233
      %p242 = scmp.eq.s32.totalorder %s39, 0
      %p243 = por %p241, %p242
      %p244 = scmp.ne.s32.totalorder %s232, %s233
      %p245 = scmp.eq.s32.totalorder %s40, 1
      %p246 = por %p244, %p245
      %p248 = scmp.ne.s32.totalorder %s233, %s247
      %p249 = scmp.eq.s32.totalorder %s40, 0
      %p250 = por %p248, %p249
      %s252 = sadd.s32 %s251, 1
      %p255 = scmp.eq.s32.totalorder %s34, 1
      %p256 = scmp.ne.s32.totalorder %s251, %s253
      %p257 = scmp.eq.s32.totalorder %s34, 0
      %p258 = por %p256, %p257
      %p259 = scmp.ne.s32.totalorder %s251, %s253
      %p260 = scmp.eq.s32.totalorder %s39, 1
      %p261 = por %p259, %p260
      %p262 = scmp.ne.s32.totalorder %s253, %s254
      %p263 = scmp.eq.s32.totalorder %s39, 0
      %p264 = por %p262, %p263
      %p265 = scmp.ne.s32.totalorder %s253, %s254
      %p266 = scmp.eq.s32.totalorder %s40, 1
      %p267 = por %p265, %p266
      %p269 = scmp.ne.s32.totalorder %s254, %s268
      %p270 = scmp.eq.s32.totalorder %s40, 0
      %p271 = por %p269, %p270
      %s273 = sadd.s32 %s272, 1
      %p276 = scmp.eq.s32.totalorder %s34, 1
      %p277 = scmp.ne.s32.totalorder %s272, %s274
      %p278 = scmp.eq.s32.totalorder %s34, 0
      %p279 = por %p277, %p278
      %p280 = scmp.ne.s32.totalorder %s272, %s274
      %p281 = scmp.eq.s32.totalorder %s39, 1
      %p282 = por %p280, %p281
      %p283 = scmp.ne.s32.totalorder %s274, %s275
      %p284 = scmp.eq.s32.totalorder %s39, 0
      %p285 = por %p283, %p284
      %p286 = scmp.ne.s32.totalorder %s274, %s275
      %p287 = scmp.eq.s32.totalorder %s40, 1
      %p288 = por %p286, %p287
      %p290 = scmp.ne.s32.totalorder %s275, %s289
      %p291 = scmp.eq.s32.totalorder %s40, 0
      %p292 = por %p290, %p291
      %s294 = sadd.s32 %s293, 1
      %p297 = scmp.eq.s32.totalorder %s34, 1
      %p298 = scmp.ne.s32.totalorder %s293, %s295
      %p299 = scmp.eq.s32.totalorder %s34, 0
      %p300 = por %p298, %p299
      %p301 = scmp.ne.s32.totalorder %s293, %s295
      %p302 = scmp.eq.s32.totalorder %s39, 1
      %p303 = por %p301, %p302
      %p304 = scmp.ne.s32.totalorder %s295, %s296
      %p305 = scmp.eq.s32.totalorder %s39, 0
      %p306 = por %p304, %p305
      %p307 = scmp.ne.s32.totalorder %s295, %s296
      %p308 = scmp.eq.s32.totalorder %s40, 1
      %p309 = por %p307, %p308
      %p311 = scmp.ne.s32.totalorder %s296, %s310
      %p312 = scmp.eq.s32.totalorder %s40, 0
      %p313 = por %p311, %p312
      %s314 = ssub.s32 %s34, %s41
      %p315 = scmp.eq.s32.totalorder %s314, 0
      %s317 = sadd.s32 %s316, 1
      %s318 = scalar_select %p315, %s316, %s317
      %p321 = pneg %p315
      %p322 = scmp.eq.s32.totalorder %s34, 1
      %p323 = por %p321, %p322
      %p324 = scmp.ne.s32.totalorder %s316, %s319
      %p325 = scmp.eq.s32.totalorder %s34, 0
      %p326 = por %p324, %p325
      %p327 = scmp.ne.s32.totalorder %s316, %s319
      %p328 = scmp.eq.s32.totalorder %s39, 1
      %p329 = por %p327, %p328
      %p330 = scmp.ne.s32.totalorder %s319, %s320
      %p331 = scmp.eq.s32.totalorder %s39, 0
      %p332 = por %p330, %p331
      %p333 = scmp.ne.s32.totalorder %s319, %s320
      %p334 = scmp.eq.s32.totalorder %s40, 1
      %p335 = por %p333, %p334
      %p337 = scmp.ne.s32.totalorder %s320, %s336
      %p338 = scmp.eq.s32.totalorder %s40, 0
      %p339 = por %p337, %p338
      %p340 = scmp.le.s32.totalorder 1, %s34
      %p341 = scmp.lt.s32.totalorder %s34, 3
      %p342 = pnand %p340, %p341
      %p343 = pneg %p342
      // Predicated region
      $region9: #{tpu_custom_call.1} parent=5 // pred_check
        _
      $region10: #{tpu_custom_call.1} parent=5 // pred_check_branch
        %345 = sbr.rel (%p342) target = $region12
      $region11: #{tpu_custom_call.1} parent=5 // pred_region
        %s346 = ssub.s32 %s34, 1
        // Predicated region
        $region13: #{tpu_custom_call.1} parent=11 // pred_check
          %p347 = pneg %p159
        $region14: #{tpu_custom_call.1} parent=11 // pred_check_branch
          %349 = sbr.rel (%p347) target = $region16
        $region15: #{tpu_custom_call.1} parent=11 // pred_region
          %s351 = ssub.s32 128, 128
          %352 = vsyncadd [#allocation9], %s351
          %s353 = sshll.u32 [#allocation10], 4
          %s354 = int_to_ptr.vmem [resolvable:$true] %s353
          %359 = dma.hbm_to_vmem [thread:$0]  %s4, 128, %s354, [#allocation9], 64, 64, 4
        $region16: #{tpu_custom_call.1} parent=11 // pred_fallthru
          _
        // Predicated region
        $region17: #{tpu_custom_call.1} parent=11 // pred_check
          %p360 = pneg %p180
        $region18: #{tpu_custom_call.1} parent=11 // pred_check_branch
          %362 = sbr.rel (%p360) target = $region20
        $region19: #{tpu_custom_call.1} parent=11 // pred_region
          %s364 = ssub.s32 16, 16
          %365 = vsyncadd [#allocation12], %s364
          %s367 = sshll.u32 [#allocation11], 4
          %s368 = int_to_ptr.vmem [resolvable:$true] %s367
          %370 = dma.hbm_to_vmem [thread:$0]  %s5, 16, %s368, [#allocation12]
        $region20: #{tpu_custom_call.1} parent=11 // pred_fallthru
          _
        // Predicated region
        $region21: #{tpu_custom_call.1} parent=11 // pred_check
          %p371 = pneg %p201
        $region22: #{tpu_custom_call.1} parent=11 // pred_check_branch
          %373 = sbr.rel (%p371) target = $region24
        $region23: #{tpu_custom_call.1} parent=11 // pred_region
          %s375 = ssub.s32 256, 256
          %376 = vsyncadd [#allocation12], %s375
          %s377 = sshll.u32 [#allocation13], 4
          %s378 = int_to_ptr.vmem [resolvable:$true] %s377
          %383 = dma.hbm_to_vmem [thread:$0]  %s6, 256, %s378, [#allocation12], 64, 64, 4
        $region24: #{tpu_custom_call.1} parent=11 // pred_fallthru
          _
        // Predicated region
        $region25: #{tpu_custom_call.1} parent=11 // pred_check
          %p384 = pneg %p222
        $region26: #{tpu_custom_call.1} parent=11 // pred_check_branch
          %386 = sbr.rel (%p384) target = $region28
        $region27: #{tpu_custom_call.1} parent=11 // pred_region
          %s388 = ssub.s32 16, 16
          %389 = vsyncadd [#allocation15], %s388
          %s391 = sshll.u32 [#allocation14], 4
          %s392 = int_to_ptr.vmem [resolvable:$true] %s391
          %394 = dma.hbm_to_vmem [thread:$0]  %s7, 16, %s392, [#allocation15]
        $region28: #{tpu_custom_call.1} parent=11 // pred_fallthru
          _
        // Predicated region
        $region29: #{tpu_custom_call.1} parent=11 // pred_check
          %p395 = pneg %p243
        $region30: #{tpu_custom_call.1} parent=11 // pred_check_branch
          %397 = sbr.rel (%p395) target = $region32
        $region31: #{tpu_custom_call.1} parent=11 // pred_region
          %s399 = ssub.s32 4096, 4096
          %400 = vsyncadd [#allocation15], %s399
          %s401 = sshll.u32 [#allocation16], 4
          %s402 = int_to_ptr.vmem [resolvable:$true] %s401
          %407 = dma.hbm_to_vmem [thread:$0]  %s8, 4096, %s402, [#allocation15], 1024, 1024, 64
        $region32: #{tpu_custom_call.1} parent=11 // pred_fallthru
          _
        // Predicated region
        $region33: #{tpu_custom_call.1} parent=11 // pred_check
          %p408 = pneg %p264
        $region34: #{tpu_custom_call.1} parent=11 // pred_check_branch
          %410 = sbr.rel (%p408) target = $region36
        $region35: #{tpu_custom_call.1} parent=11 // pred_region
          %s412 = ssub.s32 256, 256
          %413 = vsyncadd [#allocation18], %s412
          %s415 = sshll.u32 [#allocation17], 4
          %s416 = int_to_ptr.vmem [resolvable:$true] %s415
          %418 = dma.hbm_to_vmem [thread:$0]  %s9, 256, %s416, [#allocation18]
        $region36: #{tpu_custom_call.1} parent=11 // pred_fallthru
          _
        // Predicated region
        $region37: #{tpu_custom_call.1} parent=11 // pred_check
          %p419 = pneg %p285
        $region38: #{tpu_custom_call.1} parent=11 // pred_check_branch
          %421 = sbr.rel (%p419) target = $region40
        $region39: #{tpu_custom_call.1} parent=11 // pred_region
          %s423 = ssub.s32 16384, 16384
          %424 = vsyncadd [#allocation18], %s423
          %s425 = sshll.u32 [#allocation19], 4
          %s426 = int_to_ptr.vmem [resolvable:$true] %s425
          %431 = dma.hbm_to_vmem [thread:$0]  %s10, 16384, %s426, [#allocation18], 64, 64, 4
        $region40: #{tpu_custom_call.1} parent=11 // pred_fallthru
          _
        // Predicated region
        $region41: #{tpu_custom_call.1} parent=11 // pred_check
          %p432 = pneg %p306
        $region42: #{tpu_custom_call.1} parent=11 // pred_check_branch
          %434 = sbr.rel (%p432) target = $region44
        $region43: #{tpu_custom_call.1} parent=11 // pred_region
          %s436 = ssub.s32 16, 16
          %437 = vsyncadd [#allocation21], %s436
          %s439 = sshll.u32 [#allocation20], 4
          %s440 = int_to_ptr.vmem [resolvable:$true] %s439
          %442 = dma.hbm_to_vmem [thread:$0]  %s11, 16, %s440, [#allocation21]
        $region44: #{tpu_custom_call.1} parent=11 // pred_fallthru
          _
      $region12: #{tpu_custom_call.1} parent=5 // pred_fallthru
        _
      %p443 = scmp.lt.s32.totalorder %s34, 2
      // Predicated region
      $region45: #{tpu_custom_call.1} parent=5 // pred_check
        %p444 = pneg %p443
      $region46: #{tpu_custom_call.1} parent=5 // pred_check_branch
        %446 = sbr.rel (%p444) target = $region48
      $region47: #{tpu_custom_call.1} parent=5 // pred_region
        // Predicated region
        $region49: #{tpu_custom_call.1} parent=47 // pred_check
          %p447 = pneg %p54
        $region50: #{tpu_custom_call.1} parent=47 // pred_check_branch
          %449 = sbr.rel (%p447) target = $region52
        $region51: #{tpu_custom_call.1} parent=47 // pred_region
          %s450 = sand.u32 %s44, 1
          %s451 = scalar_lea.sflag [#allocation3], %s450
          %s452 = sand.u32 %s44, 1
          %s453 = smul.addr %s452, 8
          %s454 = scalar_lea.vmem [#allocation2], %s453
          %s456 = ssub.s32 128, 128
          %457 = vsyncadd %s451, %s456
          %s458 = smul.addr %s34, 2
          %s459 = smul.addr %s458, 64
          %s460 = scalar_lea.hbm %s0, %s459
          %s461 = sshll.u32 %s454, 4
          %s462 = int_to_ptr.vmem [resolvable:$true] %s461
          %467 = dma.hbm_to_vmem [thread:$0]  %s460, 128, %s462, %s451, 64, 64, 4
        $region52: #{tpu_custom_call.1} parent=47 // pred_fallthru
          _
        // Predicated region
        $region53: #{tpu_custom_call.1} parent=47 // pred_check
          %p468 = pneg %p80
        $region54: #{tpu_custom_call.1} parent=47 // pred_check_branch
          %470 = sbr.rel (%p468) target = $region56
        $region55: #{tpu_custom_call.1} parent=47 // pred_region
          %s471 = sand.u32 %s34, 1
          %s472 = scalar_lea.sflag [#allocation6], %s471
          %s473 = sand.u32 %s70, 1
          %s474 = smul.addr %s473, 8
          %s475 = scalar_lea.vmem [#allocation5], %s474
          %s477 = ssub.s32 128, 128
          %478 = vsyncadd %s472, %s477
          %s479 = smul.addr %s34, 2
          %s480 = smul.addr %s479, 64
          %s481 = scalar_lea.hbm %s1, %s480
          %s482 = sshll.u32 %s475, 4
          %s483 = int_to_ptr.vmem [resolvable:$true] %s482
          %488 = dma.hbm_to_vmem [thread:$0]  %s481, 128, %s483, %s472, 64, 64, 4
        $region56: #{tpu_custom_call.1} parent=47 // pred_fallthru
          _
        // Predicated region
        $region57: #{tpu_custom_call.1} parent=47 // pred_check
          %p489 = pneg %p106
        $region58: #{tpu_custom_call.1} parent=47 // pred_check_branch
          %491 = sbr.rel (%p489) target = $region60
        $region59: #{tpu_custom_call.1} parent=47 // pred_region
          %s492 = sand.u32 %s34, 1
          %s493 = scalar_lea.sflag [#allocation6], %s492
          %s494 = sand.u32 %s96, 1
          %s495 = smul.addr %s494, 16
          %s496 = scalar_lea.vmem [#allocation7], %s495
          %s498 = ssub.s32 256, 256
          %499 = vsyncadd %s493, %s498
          %s500 = smul.addr %s34, 2
          %s501 = smul.addr %s500, 128
          %s502 = scalar_lea.hbm %s2, %s501
          %s503 = sshll.u32 %s496, 4
          %s504 = int_to_ptr.vmem [resolvable:$true] %s503
          %509 = dma.hbm_to_vmem [thread:$0]  %s502, 256, %s504, %s493, 128, 128, 8
        $region60: #{tpu_custom_call.1} parent=47 // pred_fallthru
          _
        // Predicated region
        $region61: #{tpu_custom_call.1} parent=47 // pred_check
          %p510 = pneg %p132
        $region62: #{tpu_custom_call.1} parent=47 // pred_check_branch
          %512 = sbr.rel (%p510) target = $region64
        $region63: #{tpu_custom_call.1} parent=47 // pred_region
          %s513 = sand.u32 %s34, 1
          %s514 = scalar_lea.sflag [#allocation9], %s513
          %s515 = sand.u32 %s122, 1
          %s516 = scalar_lea.vmem [#allocation8], %s515
          %s518 = ssub.s32 16, 16
          %519 = vsyncadd %s514, %s518
          %s520 = smul.addr %s34, 16
          %s521 = scalar_lea.hbm %s3, %s520
          %s523 = sshll.u32 %s516, 4
          %s524 = int_to_ptr.vmem [resolvable:$true] %s523
          %526 = dma.hbm_to_vmem [thread:$0]  %s521, 16, %s524, %s514
        $region64: #{tpu_custom_call.1} parent=47 // pred_fallthru
          _
      $region48: #{tpu_custom_call.1} parent=5 // pred_fallthru
        _
      %p527 = scmp.le.s32.totalorder 1, %s34
      %p528 = scmp.lt.s32.totalorder %s34, 3
      %p529 = pnand %p527, %p528
      %p530 = pneg %p529
      // Predicated region
      $region65: #{tpu_custom_call.1} parent=5 // pred_check
        _
      $region66: #{tpu_custom_call.1} parent=5 // pred_check_branch
        %532 = sbr.rel (%p529) target = $region68
      $region67: #{tpu_custom_call.1} parent=5 // pred_region
        %s533 = ssub.s32 %s34, 1
        %s534 = sand.u32 %s47, 1
        %s535 = scalar_lea.sflag [#allocation3], %s534
        %s536 = sand.u32 %s47, 1
        %s537 = smul.addr %s536, 8
        %s538 = scalar_lea.vmem [#allocation2], %s537
        // Predicated region
        $region69: #{tpu_custom_call.1} parent=67 // pred_check
          %p539 = pneg %p60
        $region70: #{tpu_custom_call.1} parent=67 // pred_check_branch
          %541 = sbr.rel (%p539) target = $region72
        $region71: #{tpu_custom_call.1} parent=67 // pred_region
          %542 = dma.done %s535, 128
        $region72: #{tpu_custom_call.1} parent=67 // pred_fallthru
          _
        %s543 = sand.u32 %s39, 1
        %s544 = scalar_lea.sflag [#allocation6], %s543
        %s545 = sand.u32 %s73, 1
        %s546 = smul.addr %s545, 8
        %s547 = scalar_lea.vmem [#allocation5], %s546
        // Predicated region
        $region73: #{tpu_custom_call.1} parent=67 // pred_check
          %p548 = pneg %p86
        $region74: #{tpu_custom_call.1} parent=67 // pred_check_branch
          %550 = sbr.rel (%p548) target = $region76
        $region75: #{tpu_custom_call.1} parent=67 // pred_region
          %551 = dma.done %s544, 128
        $region76: #{tpu_custom_call.1} parent=67 // pred_fallthru
          _
        %s552 = sand.u32 %s39, 1
        %s553 = scalar_lea.sflag [#allocation6], %s552
        %s554 = sand.u32 %s99, 1
        %s555 = smul.addr %s554, 16
        %s556 = scalar_lea.vmem [#allocation7], %s555
        // Predicated region
        $region77: #{tpu_custom_call.1} parent=67 // pred_check
          %p557 = pneg %p112
        $region78: #{tpu_custom_call.1} parent=67 // pred_check_branch
          %559 = sbr.rel (%p557) target = $region80
        $region79: #{tpu_custom_call.1} parent=67 // pred_region
          %560 = dma.done %s553, 256
        $region80: #{tpu_custom_call.1} parent=67 // pred_fallthru
          _
        %s561 = sand.u32 %s39, 1
        %s562 = scalar_lea.sflag [#allocation9], %s561
        %s563 = sand.u32 %s125, 1
        %s564 = scalar_lea.vmem [#allocation8], %s563
        // Predicated region
        $region81: #{tpu_custom_call.1} parent=67 // pred_check
          %p565 = pneg %p138
        $region82: #{tpu_custom_call.1} parent=67 // pred_check_branch
          %567 = sbr.rel (%p565) target = $region84
        $region83: #{tpu_custom_call.1} parent=67 // pred_region
          %568 = dma.done %s562, 16
        $region84: #{tpu_custom_call.1} parent=67 // pred_fallthru
          _
        // Predicated region
        $region85: #{tpu_custom_call.1} parent=67 // pred_check
          %p569 = pneg %p159
        $region86: #{tpu_custom_call.1} parent=67 // pred_check_branch
          %571 = sbr.rel (%p569) target = $region88
        $region87: #{tpu_custom_call.1} parent=67 // pred_region
          %572 = dma.done [#allocation9], 128
        $region88: #{tpu_custom_call.1} parent=67 // pred_fallthru
          _
        // Predicated region
        $region89: #{tpu_custom_call.1} parent=67 // pred_check
          %p573 = pneg %p180
        $region90: #{tpu_custom_call.1} parent=67 // pred_check_branch
          %575 = sbr.rel (%p573) target = $region92
        $region91: #{tpu_custom_call.1} parent=67 // pred_region
          %576 = dma.done [#allocation12], 16
        $region92: #{tpu_custom_call.1} parent=67 // pred_fallthru
          _
        // Predicated region
        $region93: #{tpu_custom_call.1} parent=67 // pred_check
          %p577 = pneg %p201
        $region94: #{tpu_custom_call.1} parent=67 // pred_check_branch
          %579 = sbr.rel (%p577) target = $region96
        $region95: #{tpu_custom_call.1} parent=67 // pred_region
          %580 = dma.done [#allocation12], 256
        $region96: #{tpu_custom_call.1} parent=67 // pred_fallthru
          _
        // Predicated region
        $region97: #{tpu_custom_call.1} parent=67 // pred_check
          %p581 = pneg %p222
        $region98: #{tpu_custom_call.1} parent=67 // pred_check_branch
          %583 = sbr.rel (%p581) target = $region100
        $region99: #{tpu_custom_call.1} parent=67 // pred_region
          %584 = dma.done [#allocation15], 16
        $region100: #{tpu_custom_call.1} parent=67 // pred_fallthru
          _
        // Predicated region
        $region101: #{tpu_custom_call.1} parent=67 // pred_check
          %p585 = pneg %p243
        $region102: #{tpu_custom_call.1} parent=67 // pred_check_branch
          %587 = sbr.rel (%p585) target = $region104
        $region103: #{tpu_custom_call.1} parent=67 // pred_region
          %588 = dma.done [#allocation15], 4096
        $region104: #{tpu_custom_call.1} parent=67 // pred_fallthru
          _
        // Predicated region
        $region105: #{tpu_custom_call.1} parent=67 // pred_check
          %p589 = pneg %p264
        $region106: #{tpu_custom_call.1} parent=67 // pred_check_branch
          %591 = sbr.rel (%p589) target = $region108
        $region107: #{tpu_custom_call.1} parent=67 // pred_region
          %592 = dma.done [#allocation18], 256
        $region108: #{tpu_custom_call.1} parent=67 // pred_fallthru
          _
        // Predicated region
        $region109: #{tpu_custom_call.1} parent=67 // pred_check
          %p593 = pneg %p285
        $region110: #{tpu_custom_call.1} parent=67 // pred_check_branch
          %595 = sbr.rel (%p593) target = $region112
        $region111: #{tpu_custom_call.1} parent=67 // pred_region
          %596 = dma.done [#allocation18], 16384
        $region112: #{tpu_custom_call.1} parent=67 // pred_fallthru
          _
        // Predicated region
        $region113: #{tpu_custom_call.1} parent=67 // pred_check
          %p597 = pneg %p306
        $region114: #{tpu_custom_call.1} parent=67 // pred_check_branch
          %599 = sbr.rel (%p597) target = $region116
        $region115: #{tpu_custom_call.1} parent=67 // pred_region
          %600 = dma.done [#allocation21], 16
        $region116: #{tpu_custom_call.1} parent=67 // pred_fallthru
          _
        %s601 = sand.u32 %s47, 1
        %s602 = scalar_lea.sflag [#allocation3], %s601
        %s603 = sand.u32 %s47, 1
        %s604 = smul.addr %s603, 8
        %s605 = scalar_lea.vmem [#allocation2], %s604
        %p606 = pneg %p60
        %p607 = pneg %p57
        %s608 = sand.u32 %s39, 1
        %s609 = scalar_lea.sflag [#allocation6], %s608
        %s610 = sand.u32 %s73, 1
        %s611 = smul.addr %s610, 8
        %s612 = scalar_lea.vmem [#allocation5], %s611
        %p613 = pneg %p86
        %p614 = pneg %p83
        %s615 = sand.u32 %s39, 1
        %s616 = scalar_lea.sflag [#allocation6], %s615
        %s617 = sand.u32 %s99, 1
        %s618 = smul.addr %s617, 16
        %s619 = scalar_lea.vmem [#allocation7], %s618
        %p620 = pneg %p112
        %p621 = pneg %p109
        %s622 = sand.u32 %s39, 1
        %s623 = scalar_lea.sflag [#allocation9], %s622
        %s624 = sand.u32 %s125, 1
        %s625 = scalar_lea.vmem [#allocation8], %s624
        %p626 = pneg %p138
        %p627 = pneg %p135
        %p628 = pneg %p159
        %p629 = pneg %p156
        %p630 = pneg %p180
        %p631 = pneg %p177
        %p632 = pneg %p201
        %p633 = pneg %p198
        %p634 = pneg %p222
        %p635 = pneg %p219
        %p636 = pneg %p243
        %p637 = pneg %p240
        %p638 = pneg %p264
        %p639 = pneg %p261
        %p640 = pneg %p285
        %p641 = pneg %p282
        %p642 = pneg %p306
        %p643 = pneg %p303
        %p644 = pneg %p332
        %p645 = pneg %p329
        %s646 = sand.u32 %s319, 1
        %s647 = scalar_lea.sflag [#allocation4], %s646
        %s648 = sand.u32 %s319, 1
        %s649 = smul.addr %s648, 2
        %s650 = scalar_lea.vmem [#allocation22], %s649
        %v652 = vld [vmem:[%s538] sm:$0xf]
        %v653 = vld [vmem:[%s538 + $0x4] sm:$0xf]
        %v654 = vld [vmem:[%s547] sm:$0xf]
        %v655 = vld [vmem:[%s547 + $0x4] sm:$0xf]
        %v656 = vld [vmem:[%s556] sm:$0xff]
        %v657 = vld [vmem:[%s556 + $0x8] sm:$0xff]
        %v658 = vld [vmem:[%s564] sm:$0x1]
        %v661 = vunpack.c.l.b16 %v652
        %v662 = vunpack.c.l.b16 %v653
        %v663 = vpack.c.b16 %v662, %v661
        %v666 = vunpack.c.l.b16 %v654
        %v667 = vunpack.c.l.b16 %v655
        %v668 = vpack.c.b16 %v667, %v666
        %vm670 = vcmask 130048
        %v672 = vsel %vm670, %v663, 0
        %674 = vmatprep.subr.bf16.mxu0 0
        %675 = vmatpush1.bf16.msra.mxu0 %v668
        %676 = vmatprep.subr.bf16.mxu0 0
        %677 = vmatpush1.bf16.msra.mxu0 0
        %678 = vmatprep.subr.bf16.mxu0 0
        %679 = vmatpush1.bf16.msra.mxu0 0
        %680 = vmatprep.subr.bf16.mxu0 0
        %681 = vmatpush1.bf16.msra.mxu0 0
        %682 = vmatprep.subr.bf16.mxu0 0
        %683 = vmatpush1.bf16.msra.mxu0 0
        %684 = vmatprep.subr.bf16.mxu0 0
        %685 = vmatpush1.bf16.msra.mxu0 0
        %686 = vmatprep.subr.bf16.mxu0 0
        %687 = vmatpush1.bf16.msra.mxu0 0
        %688 = vmatprep.subr.bf16.mxu0 0
        %689 = vmatpush1.bf16.msra.mxu0 0
        %690 = vmatprep.subr.bf16.mxu0 0
        %691 = vmatpush1.bf16.msra.mxu0 0
        %692 = vmatprep.subr.bf16.mxu0 0
        %693 = vmatpush1.bf16.msra.mxu0 0
        %694 = vmatprep.subr.bf16.mxu0 0
        %695 = vmatpush1.bf16.msra.mxu0 0
        %696 = vmatprep.subr.bf16.mxu0 0
        %697 = vmatpush1.bf16.msra.mxu0 0
        %698 = vmatprep.subr.bf16.mxu0 0
        %699 = vmatpush1.bf16.msra.mxu0 0
        %700 = vmatprep.subr.bf16.mxu0 0
        %701 = vmatpush1.bf16.msra.mxu0 0
        %702 = vmatprep.subr.bf16.mxu0 0
        %703 = vmatpush1.bf16.msra.mxu0 0
        %704 = vmatprep.subr.bf16.mxu0 0
        %705 = vmatpush1.bf16.msra.mxu0 0
        %706 = vmatprep.mubr.bf16.mxu0 0
        %707 = vmatmul.mubr.bf16.gmra.mrb[0].mxu0 %v672
        %v708 = vpop.f32.mrb[0].mxu0
        %v709 = vadd.f32 0.0, %v708
        %v710 = vpop.f32.mrb[0].mxu0
        %v711 = vpop.f32.mrb[0].mxu0
        %v712 = vadd.f32 0.0, %v711
        %v713 = vpop.f32.mrb[0].mxu0
        %714 = vdwg.mxu0
        %v715 = vpack.c.bf16 %v712, %v709
        %v716 = vld [vmem:[#allocation10] sm:$0xf]
        %v717 = vld [vmem:[#allocation10 + $0x4] sm:$0xf]
        %v718 = vld [vmem:[#allocation11] sm:$0x1]
        %v720 = vlaneseq
        %v721 = vshrl.u32 %v720, 7
        %v722 = vsub.s32 0, %v721
        %v723 = vrot.slane %v718, %v722
        %v727 = vunpack.c.l.b16 %v716
        %v728 = vunpack.c.l.b16 %v717
        %v729 = vpack.c.b16 %v728, %v727
        %v732 = vsel %vm670, %v715, 0
        %734 = vmatprep.subr.bf16.mxu0 0
        %735 = vmatpush1.bf16.msra.mxu0 %v729
        %736 = vmatprep.subr.bf16.mxu0 0
        %737 = vmatpush1.bf16.msra.mxu0 0
        %738 = vmatprep.subr.bf16.mxu0 0
        %739 = vmatpush1.bf16.msra.mxu0 0
        %740 = vmatprep.subr.bf16.mxu0 0
        %741 = vmatpush1.bf16.msra.mxu0 0
        %742 = vmatprep.subr.bf16.mxu0 0
        %743 = vmatpush1.bf16.msra.mxu0 0
        %744 = vmatprep.subr.bf16.mxu0 0
        %745 = vmatpush1.bf16.msra.mxu0 0
        %746 = vmatprep.subr.bf16.mxu0 0
        %747 = vmatpush1.bf16.msra.mxu0 0
        %748 = vmatprep.subr.bf16.mxu0 0
        %749 = vmatpush1.bf16.msra.mxu0 0
        %750 = vmatprep.subr.bf16.mxu0 0
        %751 = vmatpush1.bf16.msra.mxu0 0
        %752 = vmatprep.subr.bf16.mxu0 0
        %753 = vmatpush1.bf16.msra.mxu0 0
        %754 = vmatprep.subr.bf16.mxu0 0
        %755 = vmatpush1.bf16.msra.mxu0 0
        %756 = vmatprep.subr.bf16.mxu0 0
        %757 = vmatpush1.bf16.msra.mxu0 0
        %758 = vmatprep.subr.bf16.mxu0 0
        %759 = vmatpush1.bf16.msra.mxu0 0
        %760 = vmatprep.subr.bf16.mxu0 0
        %761 = vmatpush1.bf16.msra.mxu0 0
        %762 = vmatprep.subr.bf16.mxu0 0
        %763 = vmatpush1.bf16.msra.mxu0 0
        %764 = vmatprep.subr.bf16.mxu0 0
        %765 = vmatpush1.bf16.msra.mxu0 0
        %766 = vmatprep.mubr.bf16.mxu0 0
        %767 = vmatmul.mubr.bf16.gmra.mrb[0].mxu0 %v732
        %v768 = vpop.f32.mrb[0].mxu0
        %v769 = vadd.f32 %v723, %v768
        %v770 = vpop.f32.mrb[0].mxu0
        %v771 = vpop.f32.mrb[0].mxu0
        %v772 = vadd.f32 %v723, %v771
        %v773 = vpop.f32.mrb[0].mxu0
        %774 = vdwg.mxu0
        %v775 = vmax.f32 %v769, 0.0
        %v776 = vmax.f32 %v772, 0.0
        %778 = vset.pattern.permute.xlu0 0
        %779 = vperm.xlu0 %778, %v656
        %v780 = vpop.permute.xlu0 %779
        %783 = vset.pattern.permute.xlu0 0
        %784 = vperm.xlu0 %783, %v657
        %v785 = vpop.permute.xlu0 %784
        %v787 = vmul.f32 %v775, %v780
        %v788 = vmul.f32 %v776, %v785
        %v789 = vpack.c.bf16 %v788, %v787
        %790 = vmatprep.subr.bf16.mxu0 0
        %791 = vmatpush1.bf16.msra.mxu0 %v789
        %792 = vmatprep.subr.bf16.mxu0 0
        %793 = vmatpush1.bf16.msra.mxu0 0
        %794 = vmatprep.subr.bf16.mxu0 0
        %795 = vmatpush1.bf16.msra.mxu0 0
        %796 = vmatprep.subr.bf16.mxu0 0
        %797 = vmatpush1.bf16.msra.mxu0 0
        %798 = vmatprep.subr.bf16.mxu0 0
        %799 = vmatpush1.bf16.msra.mxu0 0
        %800 = vmatprep.subr.bf16.mxu0 0
        %801 = vmatpush1.bf16.msra.mxu0 0
        %802 = vmatprep.subr.bf16.mxu0 0
        %803 = vmatpush1.bf16.msra.mxu0 0
        %804 = vmatprep.subr.bf16.mxu0 0
        %805 = vmatpush1.bf16.msra.mxu0 0
        %806 = vmatprep.subr.bf16.mxu0 0
        %807 = vmatpush1.bf16.msra.mxu0 0
        %808 = vmatprep.subr.bf16.mxu0 0
        %809 = vmatpush1.bf16.msra.mxu0 0
        %810 = vmatprep.subr.bf16.mxu0 0
        %811 = vmatpush1.bf16.msra.mxu0 0
        %812 = vmatprep.subr.bf16.mxu0 0
        %813 = vmatpush1.bf16.msra.mxu0 0
        %814 = vmatprep.subr.bf16.mxu0 0
        %815 = vmatpush1.bf16.msra.mxu0 0
        %816 = vmatprep.subr.bf16.mxu0 0
        %817 = vmatpush1.bf16.msra.mxu0 0
        %818 = vmatprep.subr.bf16.mxu0 0
        %819 = vmatpush1.bf16.msra.mxu0 0
        %820 = vmatprep.subr.bf16.mxu0 0
        %821 = vmatpush1.bf16.msra.mxu0 0
        %822 = vmatprep.mubr.bf16.mxu0 0
        %823 = vmatmul.mubr.bf16.gmra.mrb[0].mxu0 %v672
        %v824 = vpop.f32.mrb[0].mxu0
        %v825 = vadd.f32 0.0, %v824
        %v826 = vpop.f32.mrb[0].mxu0
        %v827 = vpop.f32.mrb[0].mxu0
        %v828 = vadd.f32 0.0, %v827
        %v829 = vpop.f32.mrb[0].mxu0
        %830 = vdwg.mxu0
        %v831 = vpack.c.bf16 %v828, %v825
        %v832 = vld [vmem:[#allocation13] sm:$0xf]
        %v833 = vld [vmem:[#allocation13 + $0x4] sm:$0xf]
        %v834 = vld [vmem:[#allocation13 + $0x8] sm:$0xf]
        %v835 = vld [vmem:[#allocation13 + $0xc] sm:$0xf]
        %v836 = vld [vmem:[#allocation14] sm:$0x1]
        %v838 = vlaneseq
        %v839 = vshrl.u32 %v838, 7
        %v840 = vsub.s32 0, %v839
        %v841 = vrot.slane %v836, %v840
        %v847 = vunpack.c.l.b16 %v832
        %v848 = vunpack.c.l.b16 %v833
        %v849 = vunpack.c.l.b16 %v834
        %v850 = vunpack.c.l.b16 %v835
        %v851 = vpack.c.b16 %v848, %v847
        %v852 = vpack.c.b16 %v850, %v849
        %vm855 = vcmask 261120
        %v857 = vsel %vm855, %v831, 0
        %859 = vmatprep.subr.bf16.mxu0 0
        %860 = vmatpush1.bf16.msra.mxu0 %v851
        %861 = vmatprep.subr.bf16.mxu0 0
        %862 = vmatpush1.bf16.msra.mxu0 %v852
        %863 = vmatprep.subr.bf16.mxu0 0
        %864 = vmatpush1.bf16.msra.mxu0 0
        %865 = vmatprep.subr.bf16.mxu0 0
        %866 = vmatpush1.bf16.msra.mxu0 0
        %867 = vmatprep.subr.bf16.mxu0 0
        %868 = vmatpush1.bf16.msra.mxu0 0
        %869 = vmatprep.subr.bf16.mxu0 0
        %870 = vmatpush1.bf16.msra.mxu0 0
        %871 = vmatprep.subr.bf16.mxu0 0
        %872 = vmatpush1.bf16.msra.mxu0 0
        %873 = vmatprep.subr.bf16.mxu0 0
        %874 = vmatpush1.bf16.msra.mxu0 0
        %875 = vmatprep.subr.bf16.mxu0 0
        %876 = vmatpush1.bf16.msra.mxu0 0
        %877 = vmatprep.subr.bf16.mxu0 0
        %878 = vmatpush1.bf16.msra.mxu0 0
        %879 = vmatprep.subr.bf16.mxu0 0
        %880 = vmatpush1.bf16.msra.mxu0 0
        %881 = vmatprep.subr.bf16.mxu0 0
        %882 = vmatpush1.bf16.msra.mxu0 0
        %883 = vmatprep.subr.bf16.mxu0 0
        %884 = vmatpush1.bf16.msra.mxu0 0
        %885 = vmatprep.subr.bf16.mxu0 0
        %886 = vmatpush1.bf16.msra.mxu0 0
        %887 = vmatprep.subr.bf16.mxu0 0
        %888 = vmatpush1.bf16.msra.mxu0 0
        %889 = vmatprep.subr.bf16.mxu0 0
        %890 = vmatpush1.bf16.msra.mxu0 0
        %891 = vmatprep.mubr.bf16.mxu0 0
        %892 = vmatmul.mubr.bf16.gmra.mrb[0].mxu0 %v857
        %v893 = vpop.f32.mrb[0].mxu0
        %v894 = vadd.f32 %v841, %v893
        %v895 = vpop.f32.mrb[0].mxu0
        %v896 = vpop.f32.mrb[0].mxu0
        %v897 = vadd.f32 %v841, %v896
        %v898 = vpop.f32.mrb[0].mxu0
        %899 = vdwg.mxu0
        %v900 = vpack.c.bf16 %v897, %v894
        %v902 = vsel %vm670, %v658, 0
        %904 = vmatprep.subr.bf16.mxu0 0
        %905 = vmatpush1.bf16.msra.mxu0 %v900
        %906 = vmatprep.subr.bf16.mxu0 0
        %907 = vmatpush1.bf16.msra.mxu0 0
        %908 = vmatprep.subr.bf16.mxu0 0
        %909 = vmatpush1.bf16.msra.mxu0 0
        %910 = vmatprep.subr.bf16.mxu0 0
        %911 = vmatpush1.bf16.msra.mxu0 0
        %912 = vmatprep.subr.bf16.mxu0 0
        %913 = vmatpush1.bf16.msra.mxu0 0
        %914 = vmatprep.subr.bf16.mxu0 0
        %915 = vmatpush1.bf16.msra.mxu0 0
        %916 = vmatprep.subr.bf16.mxu0 0
        %917 = vmatpush1.bf16.msra.mxu0 0
        %918 = vmatprep.subr.bf16.mxu0 0
        %919 = vmatpush1.bf16.msra.mxu0 0
        %920 = vmatprep.subr.bf16.mxu0 0
        %921 = vmatpush1.bf16.msra.mxu0 0
        %922 = vmatprep.subr.bf16.mxu0 0
        %923 = vmatpush1.bf16.msra.mxu0 0
        %924 = vmatprep.subr.bf16.mxu0 0
        %925 = vmatpush1.bf16.msra.mxu0 0
        %926 = vmatprep.subr.bf16.mxu0 0
        %927 = vmatpush1.bf16.msra.mxu0 0
        %928 = vmatprep.subr.bf16.mxu0 0
        %929 = vmatpush1.bf16.msra.mxu0 0
        %930 = vmatprep.subr.bf16.mxu0 0
        %931 = vmatpush1.bf16.msra.mxu0 0
        %932 = vmatprep.subr.bf16.mxu0 0
        %933 = vmatpush1.bf16.msra.mxu0 0
        %934 = vmatprep.subr.bf16.mxu0 0
        %935 = vmatpush1.bf16.msra.mxu0 0
        %936 = vmatprep.mubr.bf16.mxu0 0
        %937 = vmatmul.mubr.bf16.gmra.mrb[0].mxu0 %v902
        %v938 = vpop.f32.mrb[0].mxu0
        %v939 = vadd.f32 0.0, %v938
        %v940 = vpop.f32.mrb[0].mxu0
        %v941 = vpop.f32.mrb[0].mxu0
        %v942 = vpop.f32.mrb[0].mxu0
        %943 = vdwg.mxu0
        %v944 = vpack.c.bf16 %v939, %v939
        %v945 = vld [vmem:[#allocation16] sm:$0xff]
        %v946 = vld [vmem:[#allocation16 + $0x8] sm:$0xff]
        %v947 = vld [vmem:[#allocation16 + $0x10] sm:$0xff]
        %v948 = vld [vmem:[#allocation16 + $0x18] sm:$0xff]
        %v949 = vld [vmem:[#allocation16 + $0x20] sm:$0xff]
        %v950 = vld [vmem:[#allocation16 + $0x28] sm:$0xff]
        %v951 = vld [vmem:[#allocation16 + $0x30] sm:$0xff]
        %v952 = vld [vmem:[#allocation16 + $0x38] sm:$0xff]
        %v953 = vld [vmem:[#allocation16 + $0x40] sm:$0xff]
        %v954 = vld [vmem:[#allocation16 + $0x48] sm:$0xff]
        %v955 = vld [vmem:[#allocation16 + $0x50] sm:$0xff]
        %v956 = vld [vmem:[#allocation16 + $0x58] sm:$0xff]
        %v957 = vld [vmem:[#allocation16 + $0x60] sm:$0xff]
        %v958 = vld [vmem:[#allocation16 + $0x68] sm:$0xff]
        %v959 = vld [vmem:[#allocation16 + $0x70] sm:$0xff]
        %v960 = vld [vmem:[#allocation16 + $0x78] sm:$0xff]
        %v961 = vld [vmem:[#allocation16 + $0x80] sm:$0xff]
        %v962 = vld [vmem:[#allocation16 + $0x88] sm:$0xff]
        %v963 = vld [vmem:[#allocation16 + $0x90] sm:$0xff]
        %v964 = vld [vmem:[#allocation16 + $0x98] sm:$0xff]
        %v965 = vld [vmem:[#allocation16 + $0xa0] sm:$0xff]
        %v966 = vld [vmem:[#allocation16 + $0xa8] sm:$0xff]
        %v967 = vld [vmem:[#allocation16 + $0xb0] sm:$0xff]
        %v968 = vld [vmem:[#allocation16 + $0xb8] sm:$0xff]
        %v969 = vld [vmem:[#allocation16 + $0xc0] sm:$0xff]
        %v970 = vld [vmem:[#allocation16 + $0xc8] sm:$0xff]
        %v971 = vld [vmem:[#allocation16 + $0xd0] sm:$0xff]
        %v972 = vld [vmem:[#allocation16 + $0xd8] sm:$0xff]
        %v973 = vld [vmem:[#allocation16 + $0xe0] sm:$0xff]
        %v974 = vld [vmem:[#allocation16 + $0xe8] sm:$0xff]
        %v975 = vld [vmem:[#allocation16 + $0xf0] sm:$0xff]
        %v976 = vld [vmem:[#allocation16 + $0xf8] sm:$0xff]
        %v977 = vld [vmem:[#allocation17] sm:$0xff]
        %v978 = vld [vmem:[#allocation17 + $0x8] sm:$0xff]
        %v981 = vlaneseq
        %v982 = vshrl.u32 %v981, 7
        %v983 = vsub.s32 0, %v982
        %v984 = vrot.slane %v977, %v983
        %v985 = vlaneseq
        %v986 = vshrl.u32 %v985, 7
        %v987 = vsub.s32 1, %v986
        %v988 = vrot.slane %v977, %v987
        %v989 = vlaneseq
        %v990 = vshrl.u32 %v989, 7
        %v991 = vsub.s32 2, %v990
        %v992 = vrot.slane %v977, %v991
        %v993 = vlaneseq
        %v994 = vshrl.u32 %v993, 7
        %v995 = vsub.s32 3, %v994
        %v996 = vrot.slane %v977, %v995
        %v997 = vlaneseq
        %v998 = vshrl.u32 %v997, 7
        %v999 = vsub.s32 4, %v998
        %v1000 = vrot.slane %v977, %v999
        %v1001 = vlaneseq
        %v1002 = vshrl.u32 %v1001, 7
        %v1003 = vsub.s32 5, %v1002
        %v1004 = vrot.slane %v977, %v1003
        %v1005 = vlaneseq
        %v1006 = vshrl.u32 %v1005, 7
        %v1007 = vsub.s32 6, %v1006
        %v1008 = vrot.slane %v977, %v1007
        %v1009 = vlaneseq
        %v1010 = vshrl.u32 %v1009, 7
        %v1011 = vsub.s32 7, %v1010
        %v1012 = vrot.slane %v977, %v1011
        %v1013 = vlaneseq
        %v1014 = vshrl.u32 %v1013, 7
        %v1015 = vsub.s32 0, %v1014
        %v1016 = vrot.slane %v978, %v1015
        %v1017 = vlaneseq
        %v1018 = vshrl.u32 %v1017, 7
        %v1019 = vsub.s32 1, %v1018
        %v1020 = vrot.slane %v978, %v1019
        %v1021 = vlaneseq
        %v1022 = vshrl.u32 %v1021, 7
        %v1023 = vsub.s32 2, %v1022
        %v1024 = vrot.slane %v978, %v1023
        %v1025 = vlaneseq
        %v1026 = vshrl.u32 %v1025, 7
        %v1027 = vsub.s32 3, %v1026
        %v1028 = vrot.slane %v978, %v1027
        %v1029 = vlaneseq
        %v1030 = vshrl.u32 %v1029, 7
        %v1031 = vsub.s32 4, %v1030
        %v1032 = vrot.slane %v978, %v1031
        %v1033 = vlaneseq
        %v1034 = vshrl.u32 %v1033, 7
        %v1035 = vsub.s32 5, %v1034
        %v1036 = vrot.slane %v978, %v1035
        %v1037 = vlaneseq
        %v1038 = vshrl.u32 %v1037, 7
        %v1039 = vsub.s32 6, %v1038
        %v1040 = vrot.slane %v978, %v1039
        %v1041 = vlaneseq
        %v1042 = vshrl.u32 %v1041, 7
        %v1043 = vsub.s32 7, %v1042
        %v1044 = vrot.slane %v978, %v1043
        %v1093 = vunpack.c.l.b16 %v945
        %v1094 = vunpack.c.h.b16 %v945
        %v1095 = vunpack.c.l.b16 %v946
        %v1096 = vunpack.c.h.b16 %v946
        %v1097 = vunpack.c.l.b16 %v947
        %v1098 = vunpack.c.h.b16 %v947
        %v1099 = vunpack.c.l.b16 %v948
        %v1100 = vunpack.c.h.b16 %v948
        %v1101 = vunpack.c.l.b16 %v949
        %v1102 = vunpack.c.h.b16 %v949
        %v1103 = vunpack.c.l.b16 %v950
        %v1104 = vunpack.c.h.b16 %v950
        %v1105 = vunpack.c.l.b16 %v951
        %v1106 = vunpack.c.h.b16 %v951
        %v1107 = vunpack.c.l.b16 %v952
        %v1108 = vunpack.c.h.b16 %v952
        %v1109 = vunpack.c.l.b16 %v953
        %v1110 = vunpack.c.h.b16 %v953
        %v1111 = vunpack.c.l.b16 %v954
        %v1112 = vunpack.c.h.b16 %v954
        %v1113 = vunpack.c.l.b16 %v955
        %v1114 = vunpack.c.h.b16 %v955
        %v1115 = vunpack.c.l.b16 %v956
        %v1116 = vunpack.c.h.b16 %v956
        %v1117 = vunpack.c.l.b16 %v957
        %v1118 = vunpack.c.h.b16 %v957
        %v1119 = vunpack.c.l.b16 %v958
        %v1120 = vunpack.c.h.b16 %v958
        %v1121 = vunpack.c.l.b16 %v959
        %v1122 = vunpack.c.h.b16 %v959
        %v1123 = vunpack.c.l.b16 %v960
        %v1124 = vunpack.c.h.b16 %v960
        %v1125 = vunpack.c.l.b16 %v961
        %v1126 = vunpack.c.h.b16 %v961
        %v1127 = vunpack.c.l.b16 %v962
        %v1128 = vunpack.c.h.b16 %v962
        %v1129 = vunpack.c.l.b16 %v963
        %v1130 = vunpack.c.h.b16 %v963
        %v1131 = vunpack.c.l.b16 %v964
        %v1132 = vunpack.c.h.b16 %v964
        %v1133 = vunpack.c.l.b16 %v965
        %v1134 = vunpack.c.h.b16 %v965
        %v1135 = vunpack.c.l.b16 %v966
        %v1136 = vunpack.c.h.b16 %v966
        %v1137 = vunpack.c.l.b16 %v967
        %v1138 = vunpack.c.h.b16 %v967
        %v1139 = vunpack.c.l.b16 %v968
        %v1140 = vunpack.c.h.b16 %v968
        %v1141 = vunpack.c.l.b16 %v969
        %v1142 = vunpack.c.h.b16 %v969
        %v1143 = vunpack.c.l.b16 %v970
        %v1144 = vunpack.c.h.b16 %v970
        %v1145 = vunpack.c.l.b16 %v971
        %v1146 = vunpack.c.h.b16 %v971
        %v1147 = vunpack.c.l.b16 %v972
        %v1148 = vunpack.c.h.b16 %v972
        %v1149 = vunpack.c.l.b16 %v973
        %v1150 = vunpack.c.h.b16 %v973
        %v1151 = vunpack.c.l.b16 %v974
        %v1152 = vunpack.c.h.b16 %v974
        %v1153 = vunpack.c.l.b16 %v975
        %v1154 = vunpack.c.h.b16 %v975
        %v1155 = vunpack.c.l.b16 %v976
        %v1156 = vunpack.c.h.b16 %v976
        %v1157 = vpack.c.b16 %v1109, %v1093
        %v1158 = vpack.c.b16 %v1110, %v1094
        %v1159 = vpack.c.b16 %v1111, %v1095
        %v1160 = vpack.c.b16 %v1112, %v1096
        %v1161 = vpack.c.b16 %v1113, %v1097
        %v1162 = vpack.c.b16 %v1114, %v1098
        %v1163 = vpack.c.b16 %v1115, %v1099
        %v1164 = vpack.c.b16 %v1116, %v1100
        %v1165 = vpack.c.b16 %v1117, %v1101
        %v1166 = vpack.c.b16 %v1118, %v1102
        %v1167 = vpack.c.b16 %v1119, %v1103
        %v1168 = vpack.c.b16 %v1120, %v1104
        %v1169 = vpack.c.b16 %v1121, %v1105
        %v1170 = vpack.c.b16 %v1122, %v1106
        %v1171 = vpack.c.b16 %v1123, %v1107
        %v1172 = vpack.c.b16 %v1124, %v1108
        %v1173 = vpack.c.b16 %v1141, %v1125
        %v1174 = vpack.c.b16 %v1142, %v1126
        %v1175 = vpack.c.b16 %v1143, %v1127
        %v1176 = vpack.c.b16 %v1144, %v1128
        %v1177 = vpack.c.b16 %v1145, %v1129
        %v1178 = vpack.c.b16 %v1146, %v1130
        %v1179 = vpack.c.b16 %v1147, %v1131
        %v1180 = vpack.c.b16 %v1148, %v1132
        %v1181 = vpack.c.b16 %v1149, %v1133
        %v1182 = vpack.c.b16 %v1150, %v1134
        %v1183 = vpack.c.b16 %v1151, %v1135
        %v1184 = vpack.c.b16 %v1152, %v1136
        %v1185 = vpack.c.b16 %v1153, %v1137
        %v1186 = vpack.c.b16 %v1154, %v1138
        %v1187 = vpack.c.b16 %v1155, %v1139
        %v1188 = vpack.c.b16 %v1156, %v1140
        %v1222 = vsel %vm855, %v944, 0
        %1224 = vmatprep.subr.bf16.mxu0 %v1158
        %1225 = vmatpush1.bf16.msra.mxu0 %v1157
        %1226 = vmatprep.subr.bf16.mxu0 %v1174
        %1227 = vmatpush1.bf16.msra.mxu0 %v1173
        %1228 = vmatprep.subr.bf16.mxu0 0
        %1229 = vmatpush1.bf16.msra.mxu0 0
        %1230 = vmatprep.subr.bf16.mxu0 0
        %1231 = vmatpush1.bf16.msra.mxu0 0
        %1232 = vmatprep.subr.bf16.mxu0 0
        %1233 = vmatpush1.bf16.msra.mxu0 0
        %1234 = vmatprep.subr.bf16.mxu0 0
        %1235 = vmatpush1.bf16.msra.mxu0 0
        %1236 = vmatprep.subr.bf16.mxu0 0
        %1237 = vmatpush1.bf16.msra.mxu0 0
        %1238 = vmatprep.subr.bf16.mxu0 0
        %1239 = vmatpush1.bf16.msra.mxu0 0
        %1240 = vmatprep.subr.bf16.mxu0 0
        %1241 = vmatpush1.bf16.msra.mxu0 0
        %1242 = vmatprep.subr.bf16.mxu0 0
        %1243 = vmatpush1.bf16.msra.mxu0 0
        %1244 = vmatprep.subr.bf16.mxu0 0
        %1245 = vmatpush1.bf16.msra.mxu0 0
        %1246 = vmatprep.subr.bf16.mxu0 0
        %1247 = vmatpush1.bf16.msra.mxu0 0
        %1248 = vmatprep.subr.bf16.mxu0 0
        %1249 = vmatpush1.bf16.msra.mxu0 0
        %1250 = vmatprep.subr.bf16.mxu0 0
        %1251 = vmatpush1.bf16.msra.mxu0 0
        %1252 = vmatprep.subr.bf16.mxu0 0
        %1253 = vmatpush1.bf16.msra.mxu0 0
        %1254 = vmatprep.subr.bf16.mxu0 0
        %1255 = vmatpush1.bf16.msra.mxu0 0
        %1256 = vmatprep.mubr.bf16.mxu0 0
        %1257 = vmatmul.mubr.bf16.gmra.mrb[0].mxu0 %v1222
        %v1258 = vpop.f32.mrb[0].mxu0
        %v1259 = vadd.f32 %v984, %v1258
        %v1260 = vpop.f32.mrb[0].mxu0
        %v1261 = vadd.f32 %v988, %v1260
        %v1262 = vpop.f32.mrb[0].mxu0
        %v1263 = vpop.f32.mrb[0].mxu0
        %1264 = vdwg.mxu0
        %1265 = vmatprep.subr.bf16.mxu0 %v1160
        %1266 = vmatpush1.bf16.msra.mxu0 %v1159
        %1267 = vmatprep.subr.bf16.mxu0 %v1176
        %1268 = vmatpush1.bf16.msra.mxu0 %v1175
        %1269 = vmatprep.subr.bf16.mxu0 0
        %1270 = vmatpush1.bf16.msra.mxu0 0
        %1271 = vmatprep.subr.bf16.mxu0 0
        %1272 = vmatpush1.bf16.msra.mxu0 0
        %1273 = vmatprep.subr.bf16.mxu0 0
        %1274 = vmatpush1.bf16.msra.mxu0 0
        %1275 = vmatprep.subr.bf16.mxu0 0
        %1276 = vmatpush1.bf16.msra.mxu0 0
        %1277 = vmatprep.subr.bf16.mxu0 0
        %1278 = vmatpush1.bf16.msra.mxu0 0
        %1279 = vmatprep.subr.bf16.mxu0 0
        %1280 = vmatpush1.bf16.msra.mxu0 0
        %1281 = vmatprep.subr.bf16.mxu0 0
        %1282 = vmatpush1.bf16.msra.mxu0 0
        %1283 = vmatprep.subr.bf16.mxu0 0
        %1284 = vmatpush1.bf16.msra.mxu0 0
        %1285 = vmatprep.subr.bf16.mxu0 0
        %1286 = vmatpush1.bf16.msra.mxu0 0
        %1287 = vmatprep.subr.bf16.mxu0 0
        %1288 = vmatpush1.bf16.msra.mxu0 0
        %1289 = vmatprep.subr.bf16.mxu0 0
        %1290 = vmatpush1.bf16.msra.mxu0 0
        %1291 = vmatprep.subr.bf16.mxu0 0
        %1292 = vmatpush1.bf16.msra.mxu0 0
        %1293 = vmatprep.subr.bf16.mxu0 0
        %1294 = vmatpush1.bf16.msra.mxu0 0
        %1295 = vmatprep.subr.bf16.mxu0 0
        %1296 = vmatpush1.bf16.msra.mxu0 0
        %1297 = vmatprep.mubr.bf16.mxu0 0
        %1298 = vmatmul.mubr.bf16.gmra.mrb[0].mxu0 %v1222
        %v1299 = vpop.f32.mrb[0].mxu0
        %v1300 = vadd.f32 %v992, %v1299
        %v1301 = vpop.f32.mrb[0].mxu0
        %v1302 = vadd.f32 %v996, %v1301
        %v1303 = vpop.f32.mrb[0].mxu0
        %v1304 = vpop.f32.mrb[0].mxu0
        %1305 = vdwg.mxu0
        %1306 = vmatprep.subr.bf16.mxu0 %v1162
        %1307 = vmatpush1.bf16.msra.mxu0 %v1161
        %1308 = vmatprep.subr.bf16.mxu0 %v1178
        %1309 = vmatpush1.bf16.msra.mxu0 %v1177
        %1310 = vmatprep.subr.bf16.mxu0 0
        %1311 = vmatpush1.bf16.msra.mxu0 0
        %1312 = vmatprep.subr.bf16.mxu0 0
        %1313 = vmatpush1.bf16.msra.mxu0 0
        %1314 = vmatprep.subr.bf16.mxu0 0
        %1315 = vmatpush1.bf16.msra.mxu0 0
        %1316 = vmatprep.subr.bf16.mxu0 0
        %1317 = vmatpush1.bf16.msra.mxu0 0
        %1318 = vmatprep.subr.bf16.mxu0 0
        %1319 = vmatpush1.bf16.msra.mxu0 0
        %1320 = vmatprep.subr.bf16.mxu0 0
        %1321 = vmatpush1.bf16.msra.mxu0 0
        %1322 = vmatprep.subr.bf16.mxu0 0
        %1323 = vmatpush1.bf16.msra.mxu0 0
        %1324 = vmatprep.subr.bf16.mxu0 0
        %1325 = vmatpush1.bf16.msra.mxu0 0
        %1326 = vmatprep.subr.bf16.mxu0 0
        %1327 = vmatpush1.bf16.msra.mxu0 0
        %1328 = vmatprep.subr.bf16.mxu0 0
        %1329 = vmatpush1.bf16.msra.mxu0 0
        %1330 = vmatprep.subr.bf16.mxu0 0
        %1331 = vmatpush1.bf16.msra.mxu0 0
        %1332 = vmatprep.subr.bf16.mxu0 0
        %1333 = vmatpush1.bf16.msra.mxu0 0
        %1334 = vmatprep.subr.bf16.mxu0 0
        %1335 = vmatpush1.bf16.msra.mxu0 0
        %1336 = vmatprep.subr.bf16.mxu0 0
        %1337 = vmatpush1.bf16.msra.mxu0 0
        %1338 = vmatprep.mubr.bf16.mxu0 0
        %1339 = vmatmul.mubr.bf16.gmra.mrb[0].mxu0 %v1222
        %v1340 = vpop.f32.mrb[0].mxu0
        %v1341 = vadd.f32 %v1000, %v1340
        %v1342 = vpop.f32.mrb[0].mxu0
        %v1343 = vadd.f32 %v1004, %v1342
        %v1344 = vpop.f32.mrb[0].mxu0
        %v1345 = vpop.f32.mrb[0].mxu0
        %1346 = vdwg.mxu0
        %1347 = vmatprep.subr.bf16.mxu0 %v1164
        %1348 = vmatpush1.bf16.msra.mxu0 %v1163
        %1349 = vmatprep.subr.bf16.mxu0 %v1180
        %1350 = vmatpush1.bf16.msra.mxu0 %v1179
        %1351 = vmatprep.subr.bf16.mxu0 0
        %1352 = vmatpush1.bf16.msra.mxu0 0
        %1353 = vmatprep.subr.bf16.mxu0 0
        %1354 = vmatpush1.bf16.msra.mxu0 0
        %1355 = vmatprep.subr.bf16.mxu0 0
        %1356 = vmatpush1.bf16.msra.mxu0 0
        %1357 = vmatprep.subr.bf16.mxu0 0
        %1358 = vmatpush1.bf16.msra.mxu0 0
        %1359 = vmatprep.subr.bf16.mxu0 0
        %1360 = vmatpush1.bf16.msra.mxu0 0
        %1361 = vmatprep.subr.bf16.mxu0 0
        %1362 = vmatpush1.bf16.msra.mxu0 0
        %1363 = vmatprep.subr.bf16.mxu0 0
        %1364 = vmatpush1.bf16.msra.mxu0 0
        %1365 = vmatprep.subr.bf16.mxu0 0
        %1366 = vmatpush1.bf16.msra.mxu0 0
        %1367 = vmatprep.subr.bf16.mxu0 0
        %1368 = vmatpush1.bf16.msra.mxu0 0
        %1369 = vmatprep.subr.bf16.mxu0 0
        %1370 = vmatpush1.bf16.msra.mxu0 0
        %1371 = vmatprep.subr.bf16.mxu0 0
        %1372 = vmatpush1.bf16.msra.mxu0 0
        %1373 = vmatprep.subr.bf16.mxu0 0
        %1374 = vmatpush1.bf16.msra.mxu0 0
        %1375 = vmatprep.subr.bf16.mxu0 0
        %1376 = vmatpush1.bf16.msra.mxu0 0
        %1377 = vmatprep.subr.bf16.mxu0 0
        %1378 = vmatpush1.bf16.msra.mxu0 0
        %1379 = vmatprep.mubr.bf16.mxu0 0
        %1380 = vmatmul.mubr.bf16.gmra.mrb[0].mxu0 %v1222
        %v1381 = vpop.f32.mrb[0].mxu0
        %v1382 = vadd.f32 %v1008, %v1381
        %v1383 = vpop.f32.mrb[0].mxu0
        %v1384 = vadd.f32 %v1012, %v1383
        %v1385 = vpop.f32.mrb[0].mxu0
        %v1386 = vpop.f32.mrb[0].mxu0
        %1387 = vdwg.mxu0
        %1388 = vmatprep.subr.bf16.mxu0 %v1166
        %1389 = vmatpush1.bf16.msra.mxu0 %v1165
        %1390 = vmatprep.subr.bf16.mxu0 %v1182
        %1391 = vmatpush1.bf16.msra.mxu0 %v1181
        %1392 = vmatprep.subr.bf16.mxu0 0
        %1393 = vmatpush1.bf16.msra.mxu0 0
        %1394 = vmatprep.subr.bf16.mxu0 0
        %1395 = vmatpush1.bf16.msra.mxu0 0
        %1396 = vmatprep.subr.bf16.mxu0 0
        %1397 = vmatpush1.bf16.msra.mxu0 0
        %1398 = vmatprep.subr.bf16.mxu0 0
        %1399 = vmatpush1.bf16.msra.mxu0 0
        %1400 = vmatprep.subr.bf16.mxu0 0
        %1401 = vmatpush1.bf16.msra.mxu0 0
        %1402 = vmatprep.subr.bf16.mxu0 0
        %1403 = vmatpush1.bf16.msra.mxu0 0
        %1404 = vmatprep.subr.bf16.mxu0 0
        %1405 = vmatpush1.bf16.msra.mxu0 0
        %1406 = vmatprep.subr.bf16.mxu0 0
        %1407 = vmatpush1.bf16.msra.mxu0 0
        %1408 = vmatprep.subr.bf16.mxu0 0
        %1409 = vmatpush1.bf16.msra.mxu0 0
        %1410 = vmatprep.subr.bf16.mxu0 0
        %1411 = vmatpush1.bf16.msra.mxu0 0
        %1412 = vmatprep.subr.bf16.mxu0 0
        %1413 = vmatpush1.bf16.msra.mxu0 0
        %1414 = vmatprep.subr.bf16.mxu0 0
        %1415 = vmatpush1.bf16.msra.mxu0 0
        %1416 = vmatprep.subr.bf16.mxu0 0
        %1417 = vmatpush1.bf16.msra.mxu0 0
        %1418 = vmatprep.subr.bf16.mxu0 0
        %1419 = vmatpush1.bf16.msra.mxu0 0
        %1420 = vmatprep.mubr.bf16.mxu0 0
        %1421 = vmatmul.mubr.bf16.gmra.mrb[0].mxu0 %v1222
        %v1422 = vpop.f32.mrb[0].mxu0
        %v1423 = vadd.f32 %v1016, %v1422
        %v1424 = vpop.f32.mrb[0].mxu0
        %v1425 = vadd.f32 %v1020, %v1424
        %v1426 = vpop.f32.mrb[0].mxu0
        %v1427 = vpop.f32.mrb[0].mxu0
        %1428 = vdwg.mxu0
        %1429 = vmatprep.subr.bf16.mxu0 %v1168
        %1430 = vmatpush1.bf16.msra.mxu0 %v1167
        %1431 = vmatprep.subr.bf16.mxu0 %v1184
        %1432 = vmatpush1.bf16.msra.mxu0 %v1183
        %1433 = vmatprep.subr.bf16.mxu0 0
        %1434 = vmatpush1.bf16.msra.mxu0 0
        %1435 = vmatprep.subr.bf16.mxu0 0
        %1436 = vmatpush1.bf16.msra.mxu0 0
        %1437 = vmatprep.subr.bf16.mxu0 0
        %1438 = vmatpush1.bf16.msra.mxu0 0
        %1439 = vmatprep.subr.bf16.mxu0 0
        %1440 = vmatpush1.bf16.msra.mxu0 0
        %1441 = vmatprep.subr.bf16.mxu0 0
        %1442 = vmatpush1.bf16.msra.mxu0 0
        %1443 = vmatprep.subr.bf16.mxu0 0
        %1444 = vmatpush1.bf16.msra.mxu0 0
        %1445 = vmatprep.subr.bf16.mxu0 0
        %1446 = vmatpush1.bf16.msra.mxu0 0
        %1447 = vmatprep.subr.bf16.mxu0 0
        %1448 = vmatpush1.bf16.msra.mxu0 0
        %1449 = vmatprep.subr.bf16.mxu0 0
        %1450 = vmatpush1.bf16.msra.mxu0 0
        %1451 = vmatprep.subr.bf16.mxu0 0
        %1452 = vmatpush1.bf16.msra.mxu0 0
        %1453 = vmatprep.subr.bf16.mxu0 0
        %1454 = vmatpush1.bf16.msra.mxu0 0
        %1455 = vmatprep.subr.bf16.mxu0 0
        %1456 = vmatpush1.bf16.msra.mxu0 0
        %1457 = vmatprep.subr.bf16.mxu0 0
        %1458 = vmatpush1.bf16.msra.mxu0 0
        %1459 = vmatprep.subr.bf16.mxu0 0
        %1460 = vmatpush1.bf16.msra.mxu0 0
        %1461 = vmatprep.mubr.bf16.mxu0 0
        %1462 = vmatmul.mubr.bf16.gmra.mrb[0].mxu0 %v1222
        %v1463 = vpop.f32.mrb[0].mxu0
        %v1464 = vadd.f32 %v1024, %v1463
        %v1465 = vpop.f32.mrb[0].mxu0
        %v1466 = vadd.f32 %v1028, %v1465
        %v1467 = vpop.f32.mrb[0].mxu0
        %v1468 = vpop.f32.mrb[0].mxu0
        %1469 = vdwg.mxu0
        %1470 = vmatprep.subr.bf16.mxu0 %v1170
        %1471 = vmatpush1.bf16.msra.mxu0 %v1169
        %1472 = vmatprep.subr.bf16.mxu0 %v1186
        %1473 = vmatpush1.bf16.msra.mxu0 %v1185
        %1474 = vmatprep.subr.bf16.mxu0 0
        %1475 = vmatpush1.bf16.msra.mxu0 0
        %1476 = vmatprep.subr.bf16.mxu0 0
        %1477 = vmatpush1.bf16.msra.mxu0 0
        %1478 = vmatprep.subr.bf16.mxu0 0
        %1479 = vmatpush1.bf16.msra.mxu0 0
        %1480 = vmatprep.subr.bf16.mxu0 0
        %1481 = vmatpush1.bf16.msra.mxu0 0
        %1482 = vmatprep.subr.bf16.mxu0 0
        %1483 = vmatpush1.bf16.msra.mxu0 0
        %1484 = vmatprep.subr.bf16.mxu0 0
        %1485 = vmatpush1.bf16.msra.mxu0 0
        %1486 = vmatprep.subr.bf16.mxu0 0
        %1487 = vmatpush1.bf16.msra.mxu0 0
        %1488 = vmatprep.subr.bf16.mxu0 0
        %1489 = vmatpush1.bf16.msra.mxu0 0
        %1490 = vmatprep.subr.bf16.mxu0 0
        %1491 = vmatpush1.bf16.msra.mxu0 0
        %1492 = vmatprep.subr.bf16.mxu0 0
        %1493 = vmatpush1.bf16.msra.mxu0 0
        %1494 = vmatprep.subr.bf16.mxu0 0
        %1495 = vmatpush1.bf16.msra.mxu0 0
        %1496 = vmatprep.subr.bf16.mxu0 0
        %1497 = vmatpush1.bf16.msra.mxu0 0
        %1498 = vmatprep.subr.bf16.mxu0 0
        %1499 = vmatpush1.bf16.msra.mxu0 0
        %1500 = vmatprep.subr.bf16.mxu0 0
        %1501 = vmatpush1.bf16.msra.mxu0 0
        %1502 = vmatprep.mubr.bf16.mxu0 0
        %1503 = vmatmul.mubr.bf16.gmra.mrb[0].mxu0 %v1222
        %v1504 = vpop.f32.mrb[0].mxu0
        %v1505 = vadd.f32 %v1032, %v1504
        %v1506 = vpop.f32.mrb[0].mxu0
        %v1507 = vadd.f32 %v1036, %v1506
        %v1508 = vpop.f32.mrb[0].mxu0
        %v1509 = vpop.f32.mrb[0].mxu0
        %1510 = vdwg.mxu0
        %1511 = vmatprep.subr.bf16.mxu0 %v1172
        %1512 = vmatpush1.bf16.msra.mxu0 %v1171
        %1513 = vmatprep.subr.bf16.mxu0 %v1188
        %1514 = vmatpush1.bf16.msra.mxu0 %v1187
        %1515 = vmatprep.subr.bf16.mxu0 0
        %1516 = vmatpush1.bf16.msra.mxu0 0
        %1517 = vmatprep.subr.bf16.mxu0 0
        %1518 = vmatpush1.bf16.msra.mxu0 0
        %1519 = vmatprep.subr.bf16.mxu0 0
        %1520 = vmatpush1.bf16.msra.mxu0 0
        %1521 = vmatprep.subr.bf16.mxu0 0
        %1522 = vmatpush1.bf16.msra.mxu0 0
        %1523 = vmatprep.subr.bf16.mxu0 0
        %1524 = vmatpush1.bf16.msra.mxu0 0
        %1525 = vmatprep.subr.bf16.mxu0 0
        %1526 = vmatpush1.bf16.msra.mxu0 0
        %1527 = vmatprep.subr.bf16.mxu0 0
        %1528 = vmatpush1.bf16.msra.mxu0 0
        %1529 = vmatprep.subr.bf16.mxu0 0
        %1530 = vmatpush1.bf16.msra.mxu0 0
        %1531 = vmatprep.subr.bf16.mxu0 0
        %1532 = vmatpush1.bf16.msra.mxu0 0
        %1533 = vmatprep.subr.bf16.mxu0 0
        %1534 = vmatpush1.bf16.msra.mxu0 0
        %1535 = vmatprep.subr.bf16.mxu0 0
        %1536 = vmatpush1.bf16.msra.mxu0 0
        %1537 = vmatprep.subr.bf16.mxu0 0
        %1538 = vmatpush1.bf16.msra.mxu0 0
        %1539 = vmatprep.subr.bf16.mxu0 0
        %1540 = vmatpush1.bf16.msra.mxu0 0
        %1541 = vmatprep.subr.bf16.mxu0 0
        %1542 = vmatpush1.bf16.msra.mxu0 0
        %1543 = vmatprep.mubr.bf16.mxu0 0
        %1544 = vmatmul.mubr.bf16.gmra.mrb[0].mxu0 %v1222
        %v1545 = vpop.f32.mrb[0].mxu0
        %v1546 = vadd.f32 %v1040, %v1545
        %v1547 = vpop.f32.mrb[0].mxu0
        %v1548 = vadd.f32 %v1044, %v1547
        %v1549 = vpop.f32.mrb[0].mxu0
        %v1550 = vpop.f32.mrb[0].mxu0
        %1551 = vdwg.mxu0
        %v1552 = vxor.u32 %v1259, 2147483648
        %v1553 = vxor.u32 %v1261, 2147483648
        %v1554 = vxor.u32 %v1300, 2147483648
        %v1555 = vxor.u32 %v1302, 2147483648
        %v1556 = vxor.u32 %v1341, 2147483648
        %v1557 = vxor.u32 %v1343, 2147483648
        %v1558 = vxor.u32 %v1382, 2147483648
        %v1559 = vxor.u32 %v1384, 2147483648
        %v1560 = vxor.u32 %v1423, 2147483648
        %v1561 = vxor.u32 %v1425, 2147483648
        %v1562 = vxor.u32 %v1464, 2147483648
        %v1563 = vxor.u32 %v1466, 2147483648
        %v1564 = vxor.u32 %v1505, 2147483648
        %v1565 = vxor.u32 %v1507, 2147483648
        %v1566 = vxor.u32 %v1546, 2147483648
        %v1567 = vxor.u32 %v1548, 2147483648
        %v1568 = vmul.f32 %v1552, 1.442695
        %v1569 = vpow.pop %v1568
        %v1570 = vmul.f32 %v1553, 1.442695
        %v1571 = vpow.pop %v1570
        %v1572 = vmul.f32 %v1554, 1.442695
        %v1573 = vpow.pop %v1572
        %v1574 = vmul.f32 %v1555, 1.442695
        %v1575 = vpow.pop %v1574
        %v1576 = vmul.f32 %v1556, 1.442695
        %v1577 = vpow.pop %v1576
        %v1578 = vmul.f32 %v1557, 1.442695
        %v1579 = vpow.pop %v1578
        %v1580 = vmul.f32 %v1558, 1.442695
        %v1581 = vpow.pop %v1580
        %v1582 = vmul.f32 %v1559, 1.442695
        %v1583 = vpow.pop %v1582
        %v1584 = vmul.f32 %v1560, 1.442695
        %v1585 = vpow.pop %v1584
        %v1586 = vmul.f32 %v1561, 1.442695
        %v1587 = vpow.pop %v1586
        %v1588 = vmul.f32 %v1562, 1.442695
        %v1589 = vpow.pop %v1588
        %v1590 = vmul.f32 %v1563, 1.442695
        %v1591 = vpow.pop %v1590
        %v1592 = vmul.f32 %v1564, 1.442695
        %v1593 = vpow.pop %v1592
        %v1594 = vmul.f32 %v1565, 1.442695
        %v1595 = vpow.pop %v1594
        %v1596 = vmul.f32 %v1566, 1.442695
        %v1597 = vpow.pop %v1596
        %v1598 = vmul.f32 %v1567, 1.442695
        %v1599 = vpow.pop %v1598
        %v1600 = vadd.f32 %v1569, 1.0
        %v1601 = vadd.f32 %v1571, 1.0
        %v1602 = vadd.f32 %v1573, 1.0
        %v1603 = vadd.f32 %v1575, 1.0
        %v1604 = vadd.f32 %v1577, 1.0
        %v1605 = vadd.f32 %v1579, 1.0
        %v1606 = vadd.f32 %v1581, 1.0
        %v1607 = vadd.f32 %v1583, 1.0
        %v1608 = vadd.f32 %v1585, 1.0
        %v1609 = vadd.f32 %v1587, 1.0
        %v1610 = vadd.f32 %v1589, 1.0
        %v1611 = vadd.f32 %v1591, 1.0
        %v1612 = vadd.f32 %v1593, 1.0
        %v1613 = vadd.f32 %v1595, 1.0
        %v1614 = vadd.f32 %v1597, 1.0
        %v1615 = vadd.f32 %v1599, 1.0
        %v1616 = vrcp.pop %v1600
        %v1617 = vmul.f32 1.0, %v1616
        %v1618 = vrcp.pop %v1601
        %v1619 = vmul.f32 1.0, %v1618
        %v1620 = vrcp.pop %v1602
        %v1621 = vmul.f32 1.0, %v1620
        %v1622 = vrcp.pop %v1603
        %v1623 = vmul.f32 1.0, %v1622
        %v1624 = vrcp.pop %v1604
        %v1625 = vmul.f32 1.0, %v1624
        %v1626 = vrcp.pop %v1605
        %v1627 = vmul.f32 1.0, %v1626
        %v1628 = vrcp.pop %v1606
        %v1629 = vmul.f32 1.0, %v1628
        %v1630 = vrcp.pop %v1607
        %v1631 = vmul.f32 1.0, %v1630
        %v1632 = vrcp.pop %v1608
        %v1633 = vmul.f32 1.0, %v1632
        %v1634 = vrcp.pop %v1609
        %v1635 = vmul.f32 1.0, %v1634
        %v1636 = vrcp.pop %v1610
        %v1637 = vmul.f32 1.0, %v1636
        %v1638 = vrcp.pop %v1611
        %v1639 = vmul.f32 1.0, %v1638
        %v1640 = vrcp.pop %v1612
        %v1641 = vmul.f32 1.0, %v1640
        %v1642 = vrcp.pop %v1613
        %v1643 = vmul.f32 1.0, %v1642
        %v1644 = vrcp.pop %v1614
        %v1645 = vmul.f32 1.0, %v1644
        %v1646 = vrcp.pop %v1615
        %v1647 = vmul.f32 1.0, %v1646
        %v1648 = vpack.c.bf16 %v1617, %v1617
        %v1649 = vpack.c.bf16 %v1619, %v1619
        %v1650 = vpack.c.bf16 %v1621, %v1621
        %v1651 = vpack.c.bf16 %v1623, %v1623
        %v1652 = vpack.c.bf16 %v1625, %v1625
        %v1653 = vpack.c.bf16 %v1627, %v1627
        %v1654 = vpack.c.bf16 %v1629, %v1629
        %v1655 = vpack.c.bf16 %v1631, %v1631
        %v1656 = vpack.c.bf16 %v1633, %v1633
        %v1657 = vpack.c.bf16 %v1635, %v1635
        %v1658 = vpack.c.bf16 %v1637, %v1637
        %v1659 = vpack.c.bf16 %v1639, %v1639
        %v1660 = vpack.c.bf16 %v1641, %v1641
        %v1661 = vpack.c.bf16 %v1643, %v1643
        %v1662 = vpack.c.bf16 %v1645, %v1645
        %v1663 = vpack.c.bf16 %v1647, %v1647
        %v1664 = vld [vmem:[#allocation19] sm:$0xf]
        %v1665 = vld [vmem:[#allocation19 + $0x4] sm:$0xf]
        %v1666 = vld [vmem:[#allocation19 + $0x8] sm:$0xf]
        %v1667 = vld [vmem:[#allocation19 + $0xc] sm:$0xf]
        %v1668 = vld [vmem:[#allocation19 + $0x10] sm:$0xf]
        %v1669 = vld [vmem:[#allocation19 + $0x14] sm:$0xf]
        %v1670 = vld [vmem:[#allocation19 + $0x18] sm:$0xf]
        %v1671 = vld [vmem:[#allocation19 + $0x1c] sm:$0xf]
        %v1672 = vld [vmem:[#allocation19 + $0x20] sm:$0xf]
        %v1673 = vld [vmem:[#allocation19 + $0x24] sm:$0xf]
        %v1674 = vld [vmem:[#allocation19 + $0x28] sm:$0xf]
        %v1675 = vld [vmem:[#allocation19 + $0x2c] sm:$0xf]
        %v1676 = vld [vmem:[#allocation19 + $0x30] sm:$0xf]
        %v1677 = vld [vmem:[#allocation19 + $0x34] sm:$0xf]
        %v1678 = vld [vmem:[#allocation19 + $0x38] sm:$0xf]
        %v1679 = vld [vmem:[#allocation19 + $0x3c] sm:$0xf]
        %v1680 = vld [vmem:[#allocation19 + $0x40] sm:$0xf]
        %v1681 = vld [vmem:[#allocation19 + $0x44] sm:$0xf]
        %v1682 = vld [vmem:[#allocation19 + $0x48] sm:$0xf]
        %v1683 = vld [vmem:[#allocation19 + $0x4c] sm:$0xf]
        %v1684 = vld [vmem:[#allocation19 + $0x50] sm:$0xf]
        %v1685 = vld [vmem:[#allocation19 + $0x54] sm:$0xf]
        %v1686 = vld [vmem:[#allocation19 + $0x58] sm:$0xf]
        %v1687 = vld [vmem:[#allocation19 + $0x5c] sm:$0xf]
        %v1688 = vld [vmem:[#allocation19 + $0x60] sm:$0xf]
        %v1689 = vld [vmem:[#allocation19 + $0x64] sm:$0xf]
        %v1690 = vld [vmem:[#allocation19 + $0x68] sm:$0xf]
        %v1691 = vld [vmem:[#allocation19 + $0x6c] sm:$0xf]
        %v1692 = vld [vmem:[#allocation19 + $0x70] sm:$0xf]
        %v1693 = vld [vmem:[#allocation19 + $0x74] sm:$0xf]
        %v1694 = vld [vmem:[#allocation19 + $0x78] sm:$0xf]
        %v1695 = vld [vmem:[#allocation19 + $0x7c] sm:$0xf]
        %v1696 = vld [vmem:[#allocation19 + $0x80] sm:$0xf]
        %v1697 = vld [vmem:[#allocation19 + $0x84] sm:$0xf]
        %v1698 = vld [vmem:[#allocation19 + $0x88] sm:$0xf]
        %v1699 = vld [vmem:[#allocation19 + $0x8c] sm:$0xf]
        %v1700 = vld [vmem:[#allocation19 + $0x90] sm:$0xf]
        %v1701 = vld [vmem:[#allocation19 + $0x94] sm:$0xf]
        %v1702 = vld [vmem:[#allocation19 + $0x98] sm:$0xf]
        %v1703 = vld [vmem:[#allocation19 + $0x9c] sm:$0xf]
        %v1704 = vld [vmem:[#allocation19 + $0xa0] sm:$0xf]
        %v1705 = vld [vmem:[#allocation19 + $0xa4] sm:$0xf]
        %v1706 = vld [vmem:[#allocation19 + $0xa8] sm:$0xf]
        %v1707 = vld [vmem:[#allocation19 + $0xac] sm:$0xf]
        %v1708 = vld [vmem:[#allocation19 + $0xb0] sm:$0xf]
        %v1709 = vld [vmem:[#allocation19 + $0xb4] sm:$0xf]
        %v1710 = vld [vmem:[#allocation19 + $0xb8] sm:$0xf]
        %v1711 = vld [vmem:[#allocation19 + $0xbc] sm:$0xf]
        %v1712 = vld [vmem:[#allocation19 + $0xc0] sm:$0xf]
        %v1713 = vld [vmem:[#allocation19 + $0xc4] sm:$0xf]
        %v1714 = vld [vmem:[#allocation19 + $0xc8] sm:$0xf]
        %v1715 = vld [vmem:[#allocation19 + $0xcc] sm:$0xf]
        %v1716 = vld [vmem:[#allocation19 + $0xd0] sm:$0xf]
        %v1717 = vld [vmem:[#allocation19 + $0xd4] sm:$0xf]
        %v1718 = vld [vmem:[#allocation19 + $0xd8] sm:$0xf]
        %v1719 = vld [vmem:[#allocation19 + $0xdc] sm:$0xf]
        %v1720 = vld [vmem:[#allocation19 + $0xe0] sm:$0xf]
        %v1721 = vld [vmem:[#allocation19 + $0xe4] sm:$0xf]
        %v1722 = vld [vmem:[#allocation19 + $0xe8] sm:$0xf]
        %v1723 = vld [vmem:[#allocation19 + $0xec] sm:$0xf]
        %v1724 = vld [vmem:[#allocation19 + $0xf0] sm:$0xf]
        %v1725 = vld [vmem:[#allocation19 + $0xf4] sm:$0xf]
        %v1726 = vld [vmem:[#allocation19 + $0xf8] sm:$0xf]
        %v1727 = vld [vmem:[#allocation19 + $0xfc] sm:$0xf]
        %v1728 = vld [vmem:[#allocation19 + $0x100] sm:$0xf]
        %v1729 = vld [vmem:[#allocation19 + $0x104] sm:$0xf]
        %v1730 = vld [vmem:[#allocation19 + $0x108] sm:$0xf]
        %v1731 = vld [vmem:[#allocation19 + $0x10c] sm:$0xf]
        %v1732 = vld [vmem:[#allocation19 + $0x110] sm:$0xf]
        %v1733 = vld [vmem:[#allocation19 + $0x114] sm:$0xf]
        %v1734 = vld [vmem:[#allocation19 + $0x118] sm:$0xf]
        %v1735 = vld [vmem:[#allocation19 + $0x11c] sm:$0xf]
        %v1736 = vld [vmem:[#allocation19 + $0x120] sm:$0xf]
        %v1737 = vld [vmem:[#allocation19 + $0x124] sm:$0xf]
        %v1738 = vld [vmem:[#allocation19 + $0x128] sm:$0xf]
        %v1739 = vld [vmem:[#allocation19 + $0x12c] sm:$0xf]
        %v1740 = vld [vmem:[#allocation19 + $0x130] sm:$0xf]
        %v1741 = vld [vmem:[#allocation19 + $0x134] sm:$0xf]
        %v1742 = vld [vmem:[#allocation19 + $0x138] sm:$0xf]
        %v1743 = vld [vmem:[#allocation19 + $0x13c] sm:$0xf]
        %v1744 = vld [vmem:[#allocation19 + $0x140] sm:$0xf]
        %v1745 = vld [vmem:[#allocation19 + $0x144] sm:$0xf]
        %v1746 = vld [vmem:[#allocation19 + $0x148] sm:$0xf]
        %v1747 = vld [vmem:[#allocation19 + $0x14c] sm:$0xf]
        %v1748 = vld [vmem:[#allocation19 + $0x150] sm:$0xf]
        %v1749 = vld [vmem:[#allocation19 + $0x154] sm:$0xf]
        %v1750 = vld [vmem:[#allocation19 + $0x158] sm:$0xf]
        %v1751 = vld [vmem:[#allocation19 + $0x15c] sm:$0xf]
        %v1752 = vld [vmem:[#allocation19 + $0x160] sm:$0xf]
        %v1753 = vld [vmem:[#allocation19 + $0x164] sm:$0xf]
        %v1754 = vld [vmem:[#allocation19 + $0x168] sm:$0xf]
        %v1755 = vld [vmem:[#allocation19 + $0x16c] sm:$0xf]
        %v1756 = vld [vmem:[#allocation19 + $0x170] sm:$0xf]
        %v1757 = vld [vmem:[#allocation19 + $0x174] sm:$0xf]
        %v1758 = vld [vmem:[#allocation19 + $0x178] sm:$0xf]
        %v1759 = vld [vmem:[#allocation19 + $0x17c] sm:$0xf]
        %v1760 = vld [vmem:[#allocation19 + $0x180] sm:$0xf]
        %v1761 = vld [vmem:[#allocation19 + $0x184] sm:$0xf]
        %v1762 = vld [vmem:[#allocation19 + $0x188] sm:$0xf]
        %v1763 = vld [vmem:[#allocation19 + $0x18c] sm:$0xf]
        %v1764 = vld [vmem:[#allocation19 + $0x190] sm:$0xf]
        %v1765 = vld [vmem:[#allocation19 + $0x194] sm:$0xf]
        %v1766 = vld [vmem:[#allocation19 + $0x198] sm:$0xf]
        %v1767 = vld [vmem:[#allocation19 + $0x19c] sm:$0xf]
        %v1768 = vld [vmem:[#allocation19 + $0x1a0] sm:$0xf]
        %v1769 = vld [vmem:[#allocation19 + $0x1a4] sm:$0xf]
        %v1770 = vld [vmem:[#allocation19 + $0x1a8] sm:$0xf]
        %v1771 = vld [vmem:[#allocation19 + $0x1ac] sm:$0xf]
        %v1772 = vld [vmem:[#allocation19 + $0x1b0] sm:$0xf]
        %v1773 = vld [vmem:[#allocation19 + $0x1b4] sm:$0xf]
        %v1774 = vld [vmem:[#allocation19 + $0x1b8] sm:$0xf]
        %v1775 = vld [vmem:[#allocation19 + $0x1bc] sm:$0xf]
        %v1776 = vld [vmem:[#allocation19 + $0x1c0] sm:$0xf]
        %v1777 = vld [vmem:[#allocation19 + $0x1c4] sm:$0xf]
        %v1778 = vld [vmem:[#allocation19 + $0x1c8] sm:$0xf]
        %v1779 = vld [vmem:[#allocation19 + $0x1cc] sm:$0xf]
        %v1780 = vld [vmem:[#allocation19 + $0x1d0] sm:$0xf]
        %v1781 = vld [vmem:[#allocation19 + $0x1d4] sm:$0xf]
        %v1782 = vld [vmem:[#allocation19 + $0x1d8] sm:$0xf]
        %v1783 = vld [vmem:[#allocation19 + $0x1dc] sm:$0xf]
        %v1784 = vld [vmem:[#allocation19 + $0x1e0] sm:$0xf]
        %v1785 = vld [vmem:[#allocation19 + $0x1e4] sm:$0xf]
        %v1786 = vld [vmem:[#allocation19 + $0x1e8] sm:$0xf]
        %v1787 = vld [vmem:[#allocation19 + $0x1ec] sm:$0xf]
        %v1788 = vld [vmem:[#allocation19 + $0x1f0] sm:$0xf]
        %v1789 = vld [vmem:[#allocation19 + $0x1f4] sm:$0xf]
        %v1790 = vld [vmem:[#allocation19 + $0x1f8] sm:$0xf]
        %v1791 = vld [vmem:[#allocation19 + $0x1fc] sm:$0xf]
        %v1792 = vld [vmem:[#allocation19 + $0x200] sm:$0xf]
        %v1793 = vld [vmem:[#allocation19 + $0x204] sm:$0xf]
        %v1794 = vld [vmem:[#allocation19 + $0x208] sm:$0xf]
        %v1795 = vld [vmem:[#allocation19 + $0x20c] sm:$0xf]
        %v1796 = vld [vmem:[#allocation19 + $0x210] sm:$0xf]
        %v1797 = vld [vmem:[#allocation19 + $0x214] sm:$0xf]
        %v1798 = vld [vmem:[#allocation19 + $0x218] sm:$0xf]
        %v1799 = vld [vmem:[#allocation19 + $0x21c] sm:$0xf]
        %v1800 = vld [vmem:[#allocation19 + $0x220] sm:$0xf]
        %v1801 = vld [vmem:[#allocation19 + $0x224] sm:$0xf]
        %v1802 = vld [vmem:[#allocation19 + $0x228] sm:$0xf]
        %v1803 = vld [vmem:[#allocation19 + $0x22c] sm:$0xf]
        %v1804 = vld [vmem:[#allocation19 + $0x230] sm:$0xf]
        %v1805 = vld [vmem:[#allocation19 + $0x234] sm:$0xf]
        %v1806 = vld [vmem:[#allocation19 + $0x238] sm:$0xf]
        %v1807 = vld [vmem:[#allocation19 + $0x23c] sm:$0xf]
        %v1808 = vld [vmem:[#allocation19 + $0x240] sm:$0xf]
        %v1809 = vld [vmem:[#allocation19 + $0x244] sm:$0xf]
        %v1810 = vld [vmem:[#allocation19 + $0x248] sm:$0xf]
        %v1811 = vld [vmem:[#allocation19 + $0x24c] sm:$0xf]
        %v1812 = vld [vmem:[#allocation19 + $0x250] sm:$0xf]
        %v1813 = vld [vmem:[#allocation19 + $0x254] sm:$0xf]
        %v1814 = vld [vmem:[#allocation19 + $0x258] sm:$0xf]
        %v1815 = vld [vmem:[#allocation19 + $0x25c] sm:$0xf]
        %v1816 = vld [vmem:[#allocation19 + $0x260] sm:$0xf]
        %v1817 = vld [vmem:[#allocation19 + $0x264] sm:$0xf]
        %v1818 = vld [vmem:[#allocation19 + $0x268] sm:$0xf]
        %v1819 = vld [vmem:[#allocation19 + $0x26c] sm:$0xf]
        %v1820 = vld [vmem:[#allocation19 + $0x270] sm:$0xf]
        %v1821 = vld [vmem:[#allocation19 + $0x274] sm:$0xf]
        %v1822 = vld [vmem:[#allocation19 + $0x278] sm:$0xf]
        %v1823 = vld [vmem:[#allocation19 + $0x27c] sm:$0xf]
        %v1824 = vld [vmem:[#allocation19 + $0x280] sm:$0xf]
        %v1825 = vld [vmem:[#allocation19 + $0x284] sm:$0xf]
        %v1826 = vld [vmem:[#allocation19 + $0x288] sm:$0xf]
        %v1827 = vld [vmem:[#allocation19 + $0x28c] sm:$0xf]
        %v1828 = vld [vmem:[#allocation19 + $0x290] sm:$0xf]
        %v1829 = vld [vmem:[#allocation19 + $0x294] sm:$0xf]
        %v1830 = vld [vmem:[#allocation19 + $0x298] sm:$0xf]
        %v1831 = vld [vmem:[#allocation19 + $0x29c] sm:$0xf]
        %v1832 = vld [vmem:[#allocation19 + $0x2a0] sm:$0xf]
        %v1833 = vld [vmem:[#allocation19 + $0x2a4] sm:$0xf]
        %v1834 = vld [vmem:[#allocation19 + $0x2a8] sm:$0xf]
        %v1835 = vld [vmem:[#allocation19 + $0x2ac] sm:$0xf]
        %v1836 = vld [vmem:[#allocation19 + $0x2b0] sm:$0xf]
        %v1837 = vld [vmem:[#allocation19 + $0x2b4] sm:$0xf]
        %v1838 = vld [vmem:[#allocation19 + $0x2b8] sm:$0xf]
        %v1839 = vld [vmem:[#allocation19 + $0x2bc] sm:$0xf]
        %v1840 = vld [vmem:[#allocation19 + $0x2c0] sm:$0xf]
        %v1841 = vld [vmem:[#allocation19 + $0x2c4] sm:$0xf]
        %v1842 = vld [vmem:[#allocation19 + $0x2c8] sm:$0xf]
        %v1843 = vld [vmem:[#allocation19 + $0x2cc] sm:$0xf]
        %v1844 = vld [vmem:[#allocation19 + $0x2d0] sm:$0xf]
        %v1845 = vld [vmem:[#allocation19 + $0x2d4] sm:$0xf]
        %v1846 = vld [vmem:[#allocation19 + $0x2d8] sm:$0xf]
        %v1847 = vld [vmem:[#allocation19 + $0x2dc] sm:$0xf]
        %v1848 = vld [vmem:[#allocation19 + $0x2e0] sm:$0xf]
        %v1849 = vld [vmem:[#allocation19 + $0x2e4] sm:$0xf]
        %v1850 = vld [vmem:[#allocation19 + $0x2e8] sm:$0xf]
        %v1851 = vld [vmem:[#allocation19 + $0x2ec] sm:$0xf]
        %v1852 = vld [vmem:[#allocation19 + $0x2f0] sm:$0xf]
        %v1853 = vld [vmem:[#allocation19 + $0x2f4] sm:$0xf]
        %v1854 = vld [vmem:[#allocation19 + $0x2f8] sm:$0xf]
        %v1855 = vld [vmem:[#allocation19 + $0x2fc] sm:$0xf]
        %v1856 = vld [vmem:[#allocation19 + $0x300] sm:$0xf]
        %v1857 = vld [vmem:[#allocation19 + $0x304] sm:$0xf]
        %v1858 = vld [vmem:[#allocation19 + $0x308] sm:$0xf]
        %v1859 = vld [vmem:[#allocation19 + $0x30c] sm:$0xf]
        %v1860 = vld [vmem:[#allocation19 + $0x310] sm:$0xf]
        %v1861 = vld [vmem:[#allocation19 + $0x314] sm:$0xf]
        %v1862 = vld [vmem:[#allocation19 + $0x318] sm:$0xf]
        %v1863 = vld [vmem:[#allocation19 + $0x31c] sm:$0xf]
        %v1864 = vld [vmem:[#allocation19 + $0x320] sm:$0xf]
        %v1865 = vld [vmem:[#allocation19 + $0x324] sm:$0xf]
        %v1866 = vld [vmem:[#allocation19 + $0x328] sm:$0xf]
        %v1867 = vld [vmem:[#allocation19 + $0x32c] sm:$0xf]
        %v1868 = vld [vmem:[#allocation19 + $0x330] sm:$0xf]
        %v1869 = vld [vmem:[#allocation19 + $0x334] sm:$0xf]
        %v1870 = vld [vmem:[#allocation19 + $0x338] sm:$0xf]
        %v1871 = vld [vmem:[#allocation19 + $0x33c] sm:$0xf]
        %v1872 = vld [vmem:[#allocation19 + $0x340] sm:$0xf]
        %v1873 = vld [vmem:[#allocation19 + $0x344] sm:$0xf]
        %v1874 = vld [vmem:[#allocation19 + $0x348] sm:$0xf]
        %v1875 = vld [vmem:[#allocation19 + $0x34c] sm:$0xf]
        %v1876 = vld [vmem:[#allocation19 + $0x350] sm:$0xf]
        %v1877 = vld [vmem:[#allocation19 + $0x354] sm:$0xf]
        %v1878 = vld [vmem:[#allocation19 + $0x358] sm:$0xf]
        %v1879 = vld [vmem:[#allocation19 + $0x35c] sm:$0xf]
        %v1880 = vld [vmem:[#allocation19 + $0x360] sm:$0xf]
        %v1881 = vld [vmem:[#allocation19 + $0x364] sm:$0xf]
        %v1882 = vld [vmem:[#allocation19 + $0x368] sm:$0xf]
        %v1883 = vld [vmem:[#allocation19 + $0x36c] sm:$0xf]
        %v1884 = vld [vmem:[#allocation19 + $0x370] sm:$0xf]
        %v1885 = vld [vmem:[#allocation19 + $0x374] sm:$0xf]
        %v1886 = vld [vmem:[#allocation19 + $0x378] sm:$0xf]
        %v1887 = vld [vmem:[#allocation19 + $0x37c] sm:$0xf]
        %v1888 = vld [vmem:[#allocation19 + $0x380] sm:$0xf]
        %v1889 = vld [vmem:[#allocation19 + $0x384] sm:$0xf]
        %v1890 = vld [vmem:[#allocation19 + $0x388] sm:$0xf]
        %v1891 = vld [vmem:[#allocation19 + $0x38c] sm:$0xf]
        %v1892 = vld [vmem:[#allocation19 + $0x390] sm:$0xf]
        %v1893 = vld [vmem:[#allocation19 + $0x394] sm:$0xf]
        %v1894 = vld [vmem:[#allocation19 + $0x398] sm:$0xf]
        %v1895 = vld [vmem:[#allocation19 + $0x39c] sm:$0xf]
        %v1896 = vld [vmem:[#allocation19 + $0x3a0] sm:$0xf]
        %v1897 = vld [vmem:[#allocation19 + $0x3a4] sm:$0xf]
        %v1898 = vld [vmem:[#allocation19 + $0x3a8] sm:$0xf]
        %v1899 = vld [vmem:[#allocation19 + $0x3ac] sm:$0xf]
        %v1900 = vld [vmem:[#allocation19 + $0x3b0] sm:$0xf]
        %v1901 = vld [vmem:[#allocation19 + $0x3b4] sm:$0xf]
        %v1902 = vld [vmem:[#allocation19 + $0x3b8] sm:$0xf]
        %v1903 = vld [vmem:[#allocation19 + $0x3bc] sm:$0xf]
        %v1904 = vld [vmem:[#allocation19 + $0x3c0] sm:$0xf]
        %v1905 = vld [vmem:[#allocation19 + $0x3c4] sm:$0xf]
        %v1906 = vld [vmem:[#allocation19 + $0x3c8] sm:$0xf]
        %v1907 = vld [vmem:[#allocation19 + $0x3cc] sm:$0xf]
        %v1908 = vld [vmem:[#allocation19 + $0x3d0] sm:$0xf]
        %v1909 = vld [vmem:[#allocation19 + $0x3d4] sm:$0xf]
        %v1910 = vld [vmem:[#allocation19 + $0x3d8] sm:$0xf]
        %v1911 = vld [vmem:[#allocation19 + $0x3dc] sm:$0xf]
        %v1912 = vld [vmem:[#allocation19 + $0x3e0] sm:$0xf]
        %v1913 = vld [vmem:[#allocation19 + $0x3e4] sm:$0xf]
        %v1914 = vld [vmem:[#allocation19 + $0x3e8] sm:$0xf]
        %v1915 = vld [vmem:[#allocation19 + $0x3ec] sm:$0xf]
        %v1916 = vld [vmem:[#allocation19 + $0x3f0] sm:$0xf]
        %v1917 = vld [vmem:[#allocation19 + $0x3f4] sm:$0xf]
        %v1918 = vld [vmem:[#allocation19 + $0x3f8] sm:$0xf]
        %v1919 = vld [vmem:[#allocation19 + $0x3fc] sm:$0xf]
        %v1920 = vld [vmem:[#allocation20] sm:$0x1]
        %v1922 = vlaneseq
        %v1923 = vshrl.u32 %v1922, 7
        %v1924 = vsub.s32 0, %v1923
        %v1925 = vrot.slane %v1920, %v1924
        %v2183 = vunpack.c.l.b16 %v1664
        %v2184 = vunpack.c.l.b16 %v1665
        %v2185 = vunpack.c.l.b16 %v1666
        %v2186 = vunpack.c.l.b16 %v1667
        %v2187 = vunpack.c.l.b16 %v1668
        %v2188 = vunpack.c.l.b16 %v1669
        %v2189 = vunpack.c.l.b16 %v1670
        %v2190 = vunpack.c.l.b16 %v1671
        %v2191 = vunpack.c.l.b16 %v1672
        %v2192 = vunpack.c.l.b16 %v1673
        %v2193 = vunpack.c.l.b16 %v1674
        %v2194 = vunpack.c.l.b16 %v1675
        %v2195 = vunpack.c.l.b16 %v1676
        %v2196 = vunpack.c.l.b16 %v1677
        %v2197 = vunpack.c.l.b16 %v1678
        %v2198 = vunpack.c.l.b16 %v1679
        %v2199 = vunpack.c.l.b16 %v1680
        %v2200 = vunpack.c.l.b16 %v1681
        %v2201 = vunpack.c.l.b16 %v1682
        %v2202 = vunpack.c.l.b16 %v1683
        %v2203 = vunpack.c.l.b16 %v1684
        %v2204 = vunpack.c.l.b16 %v1685
        %v2205 = vunpack.c.l.b16 %v1686
        %v2206 = vunpack.c.l.b16 %v1687
        %v2207 = vunpack.c.l.b16 %v1688
        %v2208 = vunpack.c.l.b16 %v1689
        %v2209 = vunpack.c.l.b16 %v1690
        %v2210 = vunpack.c.l.b16 %v1691
        %v2211 = vunpack.c.l.b16 %v1692
        %v2212 = vunpack.c.l.b16 %v1693
        %v2213 = vunpack.c.l.b16 %v1694
        %v2214 = vunpack.c.l.b16 %v1695
        %v2215 = vunpack.c.l.b16 %v1696
        %v2216 = vunpack.c.l.b16 %v1697
        %v2217 = vunpack.c.l.b16 %v1698
        %v2218 = vunpack.c.l.b16 %v1699
        %v2219 = vunpack.c.l.b16 %v1700
        %v2220 = vunpack.c.l.b16 %v1701
        %v2221 = vunpack.c.l.b16 %v1702
        %v2222 = vunpack.c.l.b16 %v1703
        %v2223 = vunpack.c.l.b16 %v1704
        %v2224 = vunpack.c.l.b16 %v1705
        %v2225 = vunpack.c.l.b16 %v1706
        %v2226 = vunpack.c.l.b16 %v1707
        %v2227 = vunpack.c.l.b16 %v1708
        %v2228 = vunpack.c.l.b16 %v1709
        %v2229 = vunpack.c.l.b16 %v1710
        %v2230 = vunpack.c.l.b16 %v1711
        %v2231 = vunpack.c.l.b16 %v1712
        %v2232 = vunpack.c.l.b16 %v1713
        %v2233 = vunpack.c.l.b16 %v1714
        %v2234 = vunpack.c.l.b16 %v1715
        %v2235 = vunpack.c.l.b16 %v1716
        %v2236 = vunpack.c.l.b16 %v1717
        %v2237 = vunpack.c.l.b16 %v1718
        %v2238 = vunpack.c.l.b16 %v1719
        %v2239 = vunpack.c.l.b16 %v1720
        %v2240 = vunpack.c.l.b16 %v1721
        %v2241 = vunpack.c.l.b16 %v1722
        %v2242 = vunpack.c.l.b16 %v1723
        %v2243 = vunpack.c.l.b16 %v1724
        %v2244 = vunpack.c.l.b16 %v1725
        %v2245 = vunpack.c.l.b16 %v1726
        %v2246 = vunpack.c.l.b16 %v1727
        %v2247 = vunpack.c.l.b16 %v1728
        %v2248 = vunpack.c.l.b16 %v1729
        %v2249 = vunpack.c.l.b16 %v1730
        %v2250 = vunpack.c.l.b16 %v1731
        %v2251 = vunpack.c.l.b16 %v1732
        %v2252 = vunpack.c.l.b16 %v1733
        %v2253 = vunpack.c.l.b16 %v1734
        %v2254 = vunpack.c.l.b16 %v1735
        %v2255 = vunpack.c.l.b16 %v1736
        %v2256 = vunpack.c.l.b16 %v1737
        %v2257 = vunpack.c.l.b16 %v1738
        %v2258 = vunpack.c.l.b16 %v1739
        %v2259 = vunpack.c.l.b16 %v1740
        %v2260 = vunpack.c.l.b16 %v1741
        %v2261 = vunpack.c.l.b16 %v1742
        %v2262 = vunpack.c.l.b16 %v1743
        %v2263 = vunpack.c.l.b16 %v1744
        %v2264 = vunpack.c.l.b16 %v1745
        %v2265 = vunpack.c.l.b16 %v1746
        %v2266 = vunpack.c.l.b16 %v1747
        %v2267 = vunpack.c.l.b16 %v1748
        %v2268 = vunpack.c.l.b16 %v1749
        %v2269 = vunpack.c.l.b16 %v1750
        %v2270 = vunpack.c.l.b16 %v1751
        %v2271 = vunpack.c.l.b16 %v1752
        %v2272 = vunpack.c.l.b16 %v1753
        %v2273 = vunpack.c.l.b16 %v1754
        %v2274 = vunpack.c.l.b16 %v1755
        %v2275 = vunpack.c.l.b16 %v1756
        %v2276 = vunpack.c.l.b16 %v1757
        %v2277 = vunpack.c.l.b16 %v1758
        %v2278 = vunpack.c.l.b16 %v1759
        %v2279 = vunpack.c.l.b16 %v1760
        %v2280 = vunpack.c.l.b16 %v1761
        %v2281 = vunpack.c.l.b16 %v1762
        %v2282 = vunpack.c.l.b16 %v1763
        %v2283 = vunpack.c.l.b16 %v1764
        %v2284 = vunpack.c.l.b16 %v1765
        %v2285 = vunpack.c.l.b16 %v1766
        %v2286 = vunpack.c.l.b16 %v1767
        %v2287 = vunpack.c.l.b16 %v1768
        %v2288 = vunpack.c.l.b16 %v1769
        %v2289 = vunpack.c.l.b16 %v1770
        %v2290 = vunpack.c.l.b16 %v1771
        %v2291 = vunpack.c.l.b16 %v1772
        %v2292 = vunpack.c.l.b16 %v1773
        %v2293 = vunpack.c.l.b16 %v1774
        %v2294 = vunpack.c.l.b16 %v1775
        %v2295 = vunpack.c.l.b16 %v1776
        %v2296 = vunpack.c.l.b16 %v1777
        %v2297 = vunpack.c.l.b16 %v1778
        %v2298 = vunpack.c.l.b16 %v1779
        %v2299 = vunpack.c.l.b16 %v1780
        %v2300 = vunpack.c.l.b16 %v1781
        %v2301 = vunpack.c.l.b16 %v1782
        %v2302 = vunpack.c.l.b16 %v1783
        %v2303 = vunpack.c.l.b16 %v1784
        %v2304 = vunpack.c.l.b16 %v1785
        %v2305 = vunpack.c.l.b16 %v1786
        %v2306 = vunpack.c.l.b16 %v1787
        %v2307 = vunpack.c.l.b16 %v1788
        %v2308 = vunpack.c.l.b16 %v1789
        %v2309 = vunpack.c.l.b16 %v1790
        %v2310 = vunpack.c.l.b16 %v1791
        %v2311 = vunpack.c.l.b16 %v1792
        %v2312 = vunpack.c.l.b16 %v1793
        %v2313 = vunpack.c.l.b16 %v1794
        %v2314 = vunpack.c.l.b16 %v1795
        %v2315 = vunpack.c.l.b16 %v1796
        %v2316 = vunpack.c.l.b16 %v1797
        %v2317 = vunpack.c.l.b16 %v1798
        %v2318 = vunpack.c.l.b16 %v1799
        %v2319 = vunpack.c.l.b16 %v1800
        %v2320 = vunpack.c.l.b16 %v1801
        %v2321 = vunpack.c.l.b16 %v1802
        %v2322 = vunpack.c.l.b16 %v1803
        %v2323 = vunpack.c.l.b16 %v1804
        %v2324 = vunpack.c.l.b16 %v1805
        %v2325 = vunpack.c.l.b16 %v1806
        %v2326 = vunpack.c.l.b16 %v1807
        %v2327 = vunpack.c.l.b16 %v1808
        %v2328 = vunpack.c.l.b16 %v1809
        %v2329 = vunpack.c.l.b16 %v1810
        %v2330 = vunpack.c.l.b16 %v1811
        %v2331 = vunpack.c.l.b16 %v1812
        %v2332 = vunpack.c.l.b16 %v1813
        %v2333 = vunpack.c.l.b16 %v1814
        %v2334 = vunpack.c.l.b16 %v1815
        %v2335 = vunpack.c.l.b16 %v1816
        %v2336 = vunpack.c.l.b16 %v1817
        %v2337 = vunpack.c.l.b16 %v1818
        %v2338 = vunpack.c.l.b16 %v1819
        %v2339 = vunpack.c.l.b16 %v1820
        %v2340 = vunpack.c.l.b16 %v1821
        %v2341 = vunpack.c.l.b16 %v1822
        %v2342 = vunpack.c.l.b16 %v1823
        %v2343 = vunpack.c.l.b16 %v1824
        %v2344 = vunpack.c.l.b16 %v1825
        %v2345 = vunpack.c.l.b16 %v1826
        %v2346 = vunpack.c.l.b16 %v1827
        %v2347 = vunpack.c.l.b16 %v1828
        %v2348 = vunpack.c.l.b16 %v1829
        %v2349 = vunpack.c.l.b16 %v1830
        %v2350 = vunpack.c.l.b16 %v1831
        %v2351 = vunpack.c.l.b16 %v1832
        %v2352 = vunpack.c.l.b16 %v1833
        %v2353 = vunpack.c.l.b16 %v1834
        %v2354 = vunpack.c.l.b16 %v1835
        %v2355 = vunpack.c.l.b16 %v1836
        %v2356 = vunpack.c.l.b16 %v1837
        %v2357 = vunpack.c.l.b16 %v1838
        %v2358 = vunpack.c.l.b16 %v1839
        %v2359 = vunpack.c.l.b16 %v1840
        %v2360 = vunpack.c.l.b16 %v1841
        %v2361 = vunpack.c.l.b16 %v1842
        %v2362 = vunpack.c.l.b16 %v1843
        %v2363 = vunpack.c.l.b16 %v1844
        %v2364 = vunpack.c.l.b16 %v1845
        %v2365 = vunpack.c.l.b16 %v1846
        %v2366 = vunpack.c.l.b16 %v1847
        %v2367 = vunpack.c.l.b16 %v1848
        %v2368 = vunpack.c.l.b16 %v1849
        %v2369 = vunpack.c.l.b16 %v1850
        %v2370 = vunpack.c.l.b16 %v1851
        %v2371 = vunpack.c.l.b16 %v1852
        %v2372 = vunpack.c.l.b16 %v1853
        %v2373 = vunpack.c.l.b16 %v1854
        %v2374 = vunpack.c.l.b16 %v1855
        %v2375 = vunpack.c.l.b16 %v1856
        %v2376 = vunpack.c.l.b16 %v1857
        %v2377 = vunpack.c.l.b16 %v1858
        %v2378 = vunpack.c.l.b16 %v1859
        %v2379 = vunpack.c.l.b16 %v1860
        %v2380 = vunpack.c.l.b16 %v1861
        %v2381 = vunpack.c.l.b16 %v1862
        %v2382 = vunpack.c.l.b16 %v1863
        %v2383 = vunpack.c.l.b16 %v1864
        %v2384 = vunpack.c.l.b16 %v1865
        %v2385 = vunpack.c.l.b16 %v1866
        %v2386 = vunpack.c.l.b16 %v1867
        %v2387 = vunpack.c.l.b16 %v1868
        %v2388 = vunpack.c.l.b16 %v1869
        %v2389 = vunpack.c.l.b16 %v1870
        %v2390 = vunpack.c.l.b16 %v1871
        %v2391 = vunpack.c.l.b16 %v1872
        %v2392 = vunpack.c.l.b16 %v1873
        %v2393 = vunpack.c.l.b16 %v1874
        %v2394 = vunpack.c.l.b16 %v1875
        %v2395 = vunpack.c.l.b16 %v1876
        %v2396 = vunpack.c.l.b16 %v1877
        %v2397 = vunpack.c.l.b16 %v1878
        %v2398 = vunpack.c.l.b16 %v1879
        %v2399 = vunpack.c.l.b16 %v1880
        %v2400 = vunpack.c.l.b16 %v1881
        %v2401 = vunpack.c.l.b16 %v1882
        %v2402 = vunpack.c.l.b16 %v1883
        %v2403 = vunpack.c.l.b16 %v1884
        %v2404 = vunpack.c.l.b16 %v1885
        %v2405 = vunpack.c.l.b16 %v1886
        %v2406 = vunpack.c.l.b16 %v1887
        %v2407 = vunpack.c.l.b16 %v1888
        %v2408 = vunpack.c.l.b16 %v1889
        %v2409 = vunpack.c.l.b16 %v1890
        %v2410 = vunpack.c.l.b16 %v1891
        %v2411 = vunpack.c.l.b16 %v1892
        %v2412 = vunpack.c.l.b16 %v1893
        %v2413 = vunpack.c.l.b16 %v1894
        %v2414 = vunpack.c.l.b16 %v1895
        %v2415 = vunpack.c.l.b16 %v1896
        %v2416 = vunpack.c.l.b16 %v1897
        %v2417 = vunpack.c.l.b16 %v1898
        %v2418 = vunpack.c.l.b16 %v1899
        %v2419 = vunpack.c.l.b16 %v1900
        %v2420 = vunpack.c.l.b16 %v1901
        %v2421 = vunpack.c.l.b16 %v1902
        %v2422 = vunpack.c.l.b16 %v1903
        %v2423 = vunpack.c.l.b16 %v1904
        %v2424 = vunpack.c.l.b16 %v1905
        %v2425 = vunpack.c.l.b16 %v1906
        %v2426 = vunpack.c.l.b16 %v1907
        %v2427 = vunpack.c.l.b16 %v1908
        %v2428 = vunpack.c.l.b16 %v1909
        %v2429 = vunpack.c.l.b16 %v1910
        %v2430 = vunpack.c.l.b16 %v1911
        %v2431 = vunpack.c.l.b16 %v1912
        %v2432 = vunpack.c.l.b16 %v1913
        %v2433 = vunpack.c.l.b16 %v1914
        %v2434 = vunpack.c.l.b16 %v1915
        %v2435 = vunpack.c.l.b16 %v1916
        %v2436 = vunpack.c.l.b16 %v1917
        %v2437 = vunpack.c.l.b16 %v1918
        %v2438 = vunpack.c.l.b16 %v1919
        %v2439 = vpack.c.b16 %v2184, %v2183
        %v2440 = vpack.c.b16 %v2186, %v2185
        %v2441 = vpack.c.b16 %v2188, %v2187
        %v2442 = vpack.c.b16 %v2190, %v2189
        %v2443 = vpack.c.b16 %v2192, %v2191
        %v2444 = vpack.c.b16 %v2194, %v2193
        %v2445 = vpack.c.b16 %v2196, %v2195
        %v2446 = vpack.c.b16 %v2198, %v2197
        %v2447 = vpack.c.b16 %v2200, %v2199
        %v2448 = vpack.c.b16 %v2202, %v2201
        %v2449 = vpack.c.b16 %v2204, %v2203
        %v2450 = vpack.c.b16 %v2206, %v2205
        %v2451 = vpack.c.b16 %v2208, %v2207
        %v2452 = vpack.c.b16 %v2210, %v2209
        %v2453 = vpack.c.b16 %v2212, %v2211
        %v2454 = vpack.c.b16 %v2214, %v2213
        %v2455 = vpack.c.b16 %v2216, %v2215
        %v2456 = vpack.c.b16 %v2218, %v2217
        %v2457 = vpack.c.b16 %v2220, %v2219
        %v2458 = vpack.c.b16 %v2222, %v2221
        %v2459 = vpack.c.b16 %v2224, %v2223
        %v2460 = vpack.c.b16 %v2226, %v2225
        %v2461 = vpack.c.b16 %v2228, %v2227
        %v2462 = vpack.c.b16 %v2230, %v2229
        %v2463 = vpack.c.b16 %v2232, %v2231
        %v2464 = vpack.c.b16 %v2234, %v2233
        %v2465 = vpack.c.b16 %v2236, %v2235
        %v2466 = vpack.c.b16 %v2238, %v2237
        %v2467 = vpack.c.b16 %v2240, %v2239
        %v2468 = vpack.c.b16 %v2242, %v2241
        %v2469 = vpack.c.b16 %v2244, %v2243
        %v2470 = vpack.c.b16 %v2246, %v2245
        %v2471 = vpack.c.b16 %v2248, %v2247
        %v2472 = vpack.c.b16 %v2250, %v2249
        %v2473 = vpack.c.b16 %v2252, %v2251
        %v2474 = vpack.c.b16 %v2254, %v2253
        %v2475 = vpack.c.b16 %v2256, %v2255
        %v2476 = vpack.c.b16 %v2258, %v2257
        %v2477 = vpack.c.b16 %v2260, %v2259
        %v2478 = vpack.c.b16 %v2262, %v2261
        %v2479 = vpack.c.b16 %v2264, %v2263
        %v2480 = vpack.c.b16 %v2266, %v2265
        %v2481 = vpack.c.b16 %v2268, %v2267
        %v2482 = vpack.c.b16 %v2270, %v2269
        %v2483 = vpack.c.b16 %v2272, %v2271
        %v2484 = vpack.c.b16 %v2274, %v2273
        %v2485 = vpack.c.b16 %v2276, %v2275
        %v2486 = vpack.c.b16 %v2278, %v2277
        %v2487 = vpack.c.b16 %v2280, %v2279
        %v2488 = vpack.c.b16 %v2282, %v2281
        %v2489 = vpack.c.b16 %v2284, %v2283
        %v2490 = vpack.c.b16 %v2286, %v2285
        %v2491 = vpack.c.b16 %v2288, %v2287
        %v2492 = vpack.c.b16 %v2290, %v2289
        %v2493 = vpack.c.b16 %v2292, %v2291
        %v2494 = vpack.c.b16 %v2294, %v2293
        %v2495 = vpack.c.b16 %v2296, %v2295
        %v2496 = vpack.c.b16 %v2298, %v2297
        %v2497 = vpack.c.b16 %v2300, %v2299
        %v2498 = vpack.c.b16 %v2302, %v2301
        %v2499 = vpack.c.b16 %v2304, %v2303
        %v2500 = vpack.c.b16 %v2306, %v2305
        %v2501 = vpack.c.b16 %v2308, %v2307
        %v2502 = vpack.c.b16 %v2310, %v2309
        %v2503 = vpack.c.b16 %v2312, %v2311
        %v2504 = vpack.c.b16 %v2314, %v2313
        %v2505 = vpack.c.b16 %v2316, %v2315
        %v2506 = vpack.c.b16 %v2318, %v2317
        %v2507 = vpack.c.b16 %v2320, %v2319
        %v2508 = vpack.c.b16 %v2322, %v2321
        %v2509 = vpack.c.b16 %v2324, %v2323
        %v2510 = vpack.c.b16 %v2326, %v2325
        %v2511 = vpack.c.b16 %v2328, %v2327
        %v2512 = vpack.c.b16 %v2330, %v2329
        %v2513 = vpack.c.b16 %v2332, %v2331
        %v2514 = vpack.c.b16 %v2334, %v2333
        %v2515 = vpack.c.b16 %v2336, %v2335
        %v2516 = vpack.c.b16 %v2338, %v2337
        %v2517 = vpack.c.b16 %v2340, %v2339
        %v2518 = vpack.c.b16 %v2342, %v2341
        %v2519 = vpack.c.b16 %v2344, %v2343
        %v2520 = vpack.c.b16 %v2346, %v2345
        %v2521 = vpack.c.b16 %v2348, %v2347
        %v2522 = vpack.c.b16 %v2350, %v2349
        %v2523 = vpack.c.b16 %v2352, %v2351
        %v2524 = vpack.c.b16 %v2354, %v2353
        %v2525 = vpack.c.b16 %v2356, %v2355
        %v2526 = vpack.c.b16 %v2358, %v2357
        %v2527 = vpack.c.b16 %v2360, %v2359
        %v2528 = vpack.c.b16 %v2362, %v2361
        %v2529 = vpack.c.b16 %v2364, %v2363
        %v2530 = vpack.c.b16 %v2366, %v2365
        %v2531 = vpack.c.b16 %v2368, %v2367
        %v2532 = vpack.c.b16 %v2370, %v2369
        %v2533 = vpack.c.b16 %v2372, %v2371
        %v2534 = vpack.c.b16 %v2374, %v2373
        %v2535 = vpack.c.b16 %v2376, %v2375
        %v2536 = vpack.c.b16 %v2378, %v2377
        %v2537 = vpack.c.b16 %v2380, %v2379
        %v2538 = vpack.c.b16 %v2382, %v2381
        %v2539 = vpack.c.b16 %v2384, %v2383
        %v2540 = vpack.c.b16 %v2386, %v2385
        %v2541 = vpack.c.b16 %v2388, %v2387
        %v2542 = vpack.c.b16 %v2390, %v2389
        %v2543 = vpack.c.b16 %v2392, %v2391
        %v2544 = vpack.c.b16 %v2394, %v2393
        %v2545 = vpack.c.b16 %v2396, %v2395
        %v2546 = vpack.c.b16 %v2398, %v2397
        %v2547 = vpack.c.b16 %v2400, %v2399
        %v2548 = vpack.c.b16 %v2402, %v2401
        %v2549 = vpack.c.b16 %v2404, %v2403
        %v2550 = vpack.c.b16 %v2406, %v2405
        %v2551 = vpack.c.b16 %v2408, %v2407
        %v2552 = vpack.c.b16 %v2410, %v2409
        %v2553 = vpack.c.b16 %v2412, %v2411
        %v2554 = vpack.c.b16 %v2414, %v2413
        %v2555 = vpack.c.b16 %v2416, %v2415
        %v2556 = vpack.c.b16 %v2418, %v2417
        %v2557 = vpack.c.b16 %v2420, %v2419
        %v2558 = vpack.c.b16 %v2422, %v2421
        %v2559 = vpack.c.b16 %v2424, %v2423
        %v2560 = vpack.c.b16 %v2426, %v2425
        %v2561 = vpack.c.b16 %v2428, %v2427
        %v2562 = vpack.c.b16 %v2430, %v2429
        %v2563 = vpack.c.b16 %v2432, %v2431
        %v2564 = vpack.c.b16 %v2434, %v2433
        %v2565 = vpack.c.b16 %v2436, %v2435
        %v2566 = vpack.c.b16 %v2438, %v2437
        %2695 = vmatprep.subr.bf16.mxu0 0
        %2696 = vmatpush1.bf16.msra.mxu0 %v2439
        %2697 = vmatprep.subr.bf16.mxu0 0
        %2698 = vmatpush1.bf16.msra.mxu0 %v2440
        %2699 = vmatprep.subr.bf16.mxu0 0
        %2700 = vmatpush1.bf16.msra.mxu0 %v2441
        %2701 = vmatprep.subr.bf16.mxu0 0
        %2702 = vmatpush1.bf16.msra.mxu0 %v2442
        %2703 = vmatprep.subr.bf16.mxu0 0
        %2704 = vmatpush1.bf16.msra.mxu0 %v2443
        %2705 = vmatprep.subr.bf16.mxu0 0
        %2706 = vmatpush1.bf16.msra.mxu0 %v2444
        %2707 = vmatprep.subr.bf16.mxu0 0
        %2708 = vmatpush1.bf16.msra.mxu0 %v2445
        %2709 = vmatprep.subr.bf16.mxu0 0
        %2710 = vmatpush1.bf16.msra.mxu0 %v2446
        %2711 = vmatprep.subr.bf16.mxu0 0
        %2712 = vmatpush1.bf16.msra.mxu0 %v2447
        %2713 = vmatprep.subr.bf16.mxu0 0
        %2714 = vmatpush1.bf16.msra.mxu0 %v2448
        %2715 = vmatprep.subr.bf16.mxu0 0
        %2716 = vmatpush1.bf16.msra.mxu0 %v2449
        %2717 = vmatprep.subr.bf16.mxu0 0
        %2718 = vmatpush1.bf16.msra.mxu0 %v2450
        %2719 = vmatprep.subr.bf16.mxu0 0
        %2720 = vmatpush1.bf16.msra.mxu0 %v2451
        %2721 = vmatprep.subr.bf16.mxu0 0
        %2722 = vmatpush1.bf16.msra.mxu0 %v2452
        %2723 = vmatprep.subr.bf16.mxu0 0
        %2724 = vmatpush1.bf16.msra.mxu0 %v2453
        %2725 = vmatprep.subr.bf16.mxu0 0
        %2726 = vmatpush1.bf16.msra.mxu0 %v2454
        %2727 = vmatprep.mubr.bf16.mxu0 %v1649
        %2728 = vmatmul.mubr.bf16.gmra.mrb[0].mxu0 %v1648
        %v2729 = vpop.f32.mrb[0].mxu0
        %v2730 = vadd.f32 %v1925, %v2729
        %v2731 = vpop.f32.mrb[0].mxu0
        %v2732 = vpop.f32.mrb[0].mxu0
        %v2733 = vpop.f32.mrb[0].mxu0
        %2734 = vdwg.mxu0
        %2735 = vmatprep.subr.bf16.mxu0 0
        %2736 = vmatpush1.bf16.msra.mxu0 %v2455
        %2737 = vmatprep.subr.bf16.mxu0 0
        %2738 = vmatpush1.bf16.msra.mxu0 %v2456
        %2739 = vmatprep.subr.bf16.mxu0 0
        %2740 = vmatpush1.bf16.msra.mxu0 %v2457
        %2741 = vmatprep.subr.bf16.mxu0 0
        %2742 = vmatpush1.bf16.msra.mxu0 %v2458
        %2743 = vmatprep.subr.bf16.mxu0 0
        %2744 = vmatpush1.bf16.msra.mxu0 %v2459
        %2745 = vmatprep.subr.bf16.mxu0 0
        %2746 = vmatpush1.bf16.msra.mxu0 %v2460
        %2747 = vmatprep.subr.bf16.mxu0 0
        %2748 = vmatpush1.bf16.msra.mxu0 %v2461
        %2749 = vmatprep.subr.bf16.mxu0 0
        %2750 = vmatpush1.bf16.msra.mxu0 %v2462
        %2751 = vmatprep.subr.bf16.mxu0 0
        %2752 = vmatpush1.bf16.msra.mxu0 %v2463
        %2753 = vmatprep.subr.bf16.mxu0 0
        %2754 = vmatpush1.bf16.msra.mxu0 %v2464
        %2755 = vmatprep.subr.bf16.mxu0 0
        %2756 = vmatpush1.bf16.msra.mxu0 %v2465
        %2757 = vmatprep.subr.bf16.mxu0 0
        %2758 = vmatpush1.bf16.msra.mxu0 %v2466
        %2759 = vmatprep.subr.bf16.mxu0 0
        %2760 = vmatpush1.bf16.msra.mxu0 %v2467
        %2761 = vmatprep.subr.bf16.mxu0 0
        %2762 = vmatpush1.bf16.msra.mxu0 %v2468
        %2763 = vmatprep.subr.bf16.mxu0 0
        %2764 = vmatpush1.bf16.msra.mxu0 %v2469
        %2765 = vmatprep.subr.bf16.mxu0 0
        %2766 = vmatpush1.bf16.msra.mxu0 %v2470
        %2767 = vmatprep.mubr.bf16.mxu0 %v1651
        %2768 = vmatmul.mubr.bf16.gmra.mrb[0].mxu0 %v1650
        %v2769 = vpop.f32.mrb[0].mxu0
        %v2770 = vadd.f32 %v2730, %v2769
        %v2771 = vpop.f32.mrb[0].mxu0
        %v2772 = vpop.f32.mrb[0].mxu0
        %v2773 = vpop.f32.mrb[0].mxu0
        %2774 = vdwg.mxu0
        %2775 = vmatprep.subr.bf16.mxu0 0
        %2776 = vmatpush1.bf16.msra.mxu0 %v2471
        %2777 = vmatprep.subr.bf16.mxu0 0
        %2778 = vmatpush1.bf16.msra.mxu0 %v2472
        %2779 = vmatprep.subr.bf16.mxu0 0
        %2780 = vmatpush1.bf16.msra.mxu0 %v2473
        %2781 = vmatprep.subr.bf16.mxu0 0
        %2782 = vmatpush1.bf16.msra.mxu0 %v2474
        %2783 = vmatprep.subr.bf16.mxu0 0
        %2784 = vmatpush1.bf16.msra.mxu0 %v2475
        %2785 = vmatprep.subr.bf16.mxu0 0
        %2786 = vmatpush1.bf16.msra.mxu0 %v2476
        %2787 = vmatprep.subr.bf16.mxu0 0
        %2788 = vmatpush1.bf16.msra.mxu0 %v2477
        %2789 = vmatprep.subr.bf16.mxu0 0
        %2790 = vmatpush1.bf16.msra.mxu0 %v2478
        %2791 = vmatprep.subr.bf16.mxu0 0
        %2792 = vmatpush1.bf16.msra.mxu0 %v2479
        %2793 = vmatprep.subr.bf16.mxu0 0
        %2794 = vmatpush1.bf16.msra.mxu0 %v2480
        %2795 = vmatprep.subr.bf16.mxu0 0
        %2796 = vmatpush1.bf16.msra.mxu0 %v2481
        %2797 = vmatprep.subr.bf16.mxu0 0
        %2798 = vmatpush1.bf16.msra.mxu0 %v2482
        %2799 = vmatprep.subr.bf16.mxu0 0
        %2800 = vmatpush1.bf16.msra.mxu0 %v2483
        %2801 = vmatprep.subr.bf16.mxu0 0
        %2802 = vmatpush1.bf16.msra.mxu0 %v2484
        %2803 = vmatprep.subr.bf16.mxu0 0
        %2804 = vmatpush1.bf16.msra.mxu0 %v2485
        %2805 = vmatprep.subr.bf16.mxu0 0
        %2806 = vmatpush1.bf16.msra.mxu0 %v2486
        %2807 = vmatprep.mubr.bf16.mxu0 %v1653
        %2808 = vmatmul.mubr.bf16.gmra.mrb[0].mxu0 %v1652
        %v2809 = vpop.f32.mrb[0].mxu0
        %v2810 = vadd.f32 %v2770, %v2809
        %v2811 = vpop.f32.mrb[0].mxu0
        %v2812 = vpop.f32.mrb[0].mxu0
        %v2813 = vpop.f32.mrb[0].mxu0
        %2814 = vdwg.mxu0
        %2815 = vmatprep.subr.bf16.mxu0 0
        %2816 = vmatpush1.bf16.msra.mxu0 %v2487
        %2817 = vmatprep.subr.bf16.mxu0 0
        %2818 = vmatpush1.bf16.msra.mxu0 %v2488
        %2819 = vmatprep.subr.bf16.mxu0 0
        %2820 = vmatpush1.bf16.msra.mxu0 %v2489
        %2821 = vmatprep.subr.bf16.mxu0 0
        %2822 = vmatpush1.bf16.msra.mxu0 %v2490
        %2823 = vmatprep.subr.bf16.mxu0 0
        %2824 = vmatpush1.bf16.msra.mxu0 %v2491
        %2825 = vmatprep.subr.bf16.mxu0 0
        %2826 = vmatpush1.bf16.msra.mxu0 %v2492
        %2827 = vmatprep.subr.bf16.mxu0 0
        %2828 = vmatpush1.bf16.msra.mxu0 %v2493
        %2829 = vmatprep.subr.bf16.mxu0 0
        %2830 = vmatpush1.bf16.msra.mxu0 %v2494
        %2831 = vmatprep.subr.bf16.mxu0 0
        %2832 = vmatpush1.bf16.msra.mxu0 %v2495
        %2833 = vmatprep.subr.bf16.mxu0 0
        %2834 = vmatpush1.bf16.msra.mxu0 %v2496
        %2835 = vmatprep.subr.bf16.mxu0 0
        %2836 = vmatpush1.bf16.msra.mxu0 %v2497
        %2837 = vmatprep.subr.bf16.mxu0 0
        %2838 = vmatpush1.bf16.msra.mxu0 %v2498
        %2839 = vmatprep.subr.bf16.mxu0 0
        %2840 = vmatpush1.bf16.msra.mxu0 %v2499
        %2841 = vmatprep.subr.bf16.mxu0 0
        %2842 = vmatpush1.bf16.msra.mxu0 %v2500
        %2843 = vmatprep.subr.bf16.mxu0 0
        %2844 = vmatpush1.bf16.msra.mxu0 %v2501
        %2845 = vmatprep.subr.bf16.mxu0 0
        %2846 = vmatpush1.bf16.msra.mxu0 %v2502
        %2847 = vmatprep.mubr.bf16.mxu0 %v1655
        %2848 = vmatmul.mubr.bf16.gmra.mrb[0].mxu0 %v1654
        %v2849 = vpop.f32.mrb[0].mxu0
        %v2850 = vadd.f32 %v2810, %v2849
        %v2851 = vpop.f32.mrb[0].mxu0
        %v2852 = vpop.f32.mrb[0].mxu0
        %v2853 = vpop.f32.mrb[0].mxu0
        %2854 = vdwg.mxu0
        %2855 = vmatprep.subr.bf16.mxu0 0
        %2856 = vmatpush1.bf16.msra.mxu0 %v2503
        %2857 = vmatprep.subr.bf16.mxu0 0
        %2858 = vmatpush1.bf16.msra.mxu0 %v2504
        %2859 = vmatprep.subr.bf16.mxu0 0
        %2860 = vmatpush1.bf16.msra.mxu0 %v2505
        %2861 = vmatprep.subr.bf16.mxu0 0
        %2862 = vmatpush1.bf16.msra.mxu0 %v2506
        %2863 = vmatprep.subr.bf16.mxu0 0
        %2864 = vmatpush1.bf16.msra.mxu0 %v2507
        %2865 = vmatprep.subr.bf16.mxu0 0
        %2866 = vmatpush1.bf16.msra.mxu0 %v2508
        %2867 = vmatprep.subr.bf16.mxu0 0
        %2868 = vmatpush1.bf16.msra.mxu0 %v2509
        %2869 = vmatprep.subr.bf16.mxu0 0
        %2870 = vmatpush1.bf16.msra.mxu0 %v2510
        %2871 = vmatprep.subr.bf16.mxu0 0
        %2872 = vmatpush1.bf16.msra.mxu0 %v2511
        %2873 = vmatprep.subr.bf16.mxu0 0
        %2874 = vmatpush1.bf16.msra.mxu0 %v2512
        %2875 = vmatprep.subr.bf16.mxu0 0
        %2876 = vmatpush1.bf16.msra.mxu0 %v2513
        %2877 = vmatprep.subr.bf16.mxu0 0
        %2878 = vmatpush1.bf16.msra.mxu0 %v2514
        %2879 = vmatprep.subr.bf16.mxu0 0
        %2880 = vmatpush1.bf16.msra.mxu0 %v2515
        %2881 = vmatprep.subr.bf16.mxu0 0
        %2882 = vmatpush1.bf16.msra.mxu0 %v2516
        %2883 = vmatprep.subr.bf16.mxu0 0
        %2884 = vmatpush1.bf16.msra.mxu0 %v2517
        %2885 = vmatprep.subr.bf16.mxu0 0
        %2886 = vmatpush1.bf16.msra.mxu0 %v2518
        %2887 = vmatprep.mubr.bf16.mxu0 %v1657
        %2888 = vmatmul.mubr.bf16.gmra.mrb[0].mxu0 %v1656
        %v2889 = vpop.f32.mrb[0].mxu0
        %v2890 = vadd.f32 %v2850, %v2889
        %v2891 = vpop.f32.mrb[0].mxu0
        %v2892 = vpop.f32.mrb[0].mxu0
        %v2893 = vpop.f32.mrb[0].mxu0
        %2894 = vdwg.mxu0
        %2895 = vmatprep.subr.bf16.mxu0 0
        %2896 = vmatpush1.bf16.msra.mxu0 %v2519
        %2897 = vmatprep.subr.bf16.mxu0 0
        %2898 = vmatpush1.bf16.msra.mxu0 %v2520
        %2899 = vmatprep.subr.bf16.mxu0 0
        %2900 = vmatpush1.bf16.msra.mxu0 %v2521
        %2901 = vmatprep.subr.bf16.mxu0 0
        %2902 = vmatpush1.bf16.msra.mxu0 %v2522
        %2903 = vmatprep.subr.bf16.mxu0 0
        %2904 = vmatpush1.bf16.msra.mxu0 %v2523
        %2905 = vmatprep.subr.bf16.mxu0 0
        %2906 = vmatpush1.bf16.msra.mxu0 %v2524
        %2907 = vmatprep.subr.bf16.mxu0 0
        %2908 = vmatpush1.bf16.msra.mxu0 %v2525
        %2909 = vmatprep.subr.bf16.mxu0 0
        %2910 = vmatpush1.bf16.msra.mxu0 %v2526
        %2911 = vmatprep.subr.bf16.mxu0 0
        %2912 = vmatpush1.bf16.msra.mxu0 %v2527
        %2913 = vmatprep.subr.bf16.mxu0 0
        %2914 = vmatpush1.bf16.msra.mxu0 %v2528
        %2915 = vmatprep.subr.bf16.mxu0 0
        %2916 = vmatpush1.bf16.msra.mxu0 %v2529
        %2917 = vmatprep.subr.bf16.mxu0 0
        %2918 = vmatpush1.bf16.msra.mxu0 %v2530
        %2919 = vmatprep.subr.bf16.mxu0 0
        %2920 = vmatpush1.bf16.msra.mxu0 %v2531
        %2921 = vmatprep.subr.bf16.mxu0 0
        %2922 = vmatpush1.bf16.msra.mxu0 %v2532
        %2923 = vmatprep.subr.bf16.mxu0 0
        %2924 = vmatpush1.bf16.msra.mxu0 %v2533
        %2925 = vmatprep.subr.bf16.mxu0 0
        %2926 = vmatpush1.bf16.msra.mxu0 %v2534
        %2927 = vmatprep.mubr.bf16.mxu0 %v1659
        %2928 = vmatmul.mubr.bf16.gmra.mrb[0].mxu0 %v1658
        %v2929 = vpop.f32.mrb[0].mxu0
        %v2930 = vadd.f32 %v2890, %v2929
        %v2931 = vpop.f32.mrb[0].mxu0
        %v2932 = vpop.f32.mrb[0].mxu0
        %v2933 = vpop.f32.mrb[0].mxu0
        %2934 = vdwg.mxu0
        %2935 = vmatprep.subr.bf16.mxu0 0
        %2936 = vmatpush1.bf16.msra.mxu0 %v2535
        %2937 = vmatprep.subr.bf16.mxu0 0
        %2938 = vmatpush1.bf16.msra.mxu0 %v2536
        %2939 = vmatprep.subr.bf16.mxu0 0
        %2940 = vmatpush1.bf16.msra.mxu0 %v2537
        %2941 = vmatprep.subr.bf16.mxu0 0
        %2942 = vmatpush1.bf16.msra.mxu0 %v2538
        %2943 = vmatprep.subr.bf16.mxu0 0
        %2944 = vmatpush1.bf16.msra.mxu0 %v2539
        %2945 = vmatprep.subr.bf16.mxu0 0
        %2946 = vmatpush1.bf16.msra.mxu0 %v2540
        %2947 = vmatprep.subr.bf16.mxu0 0
        %2948 = vmatpush1.bf16.msra.mxu0 %v2541
        %2949 = vmatprep.subr.bf16.mxu0 0
        %2950 = vmatpush1.bf16.msra.mxu0 %v2542
        %2951 = vmatprep.subr.bf16.mxu0 0
        %2952 = vmatpush1.bf16.msra.mxu0 %v2543
        %2953 = vmatprep.subr.bf16.mxu0 0
        %2954 = vmatpush1.bf16.msra.mxu0 %v2544
        %2955 = vmatprep.subr.bf16.mxu0 0
        %2956 = vmatpush1.bf16.msra.mxu0 %v2545
        %2957 = vmatprep.subr.bf16.mxu0 0
        %2958 = vmatpush1.bf16.msra.mxu0 %v2546
        %2959 = vmatprep.subr.bf16.mxu0 0
        %2960 = vmatpush1.bf16.msra.mxu0 %v2547
        %2961 = vmatprep.subr.bf16.mxu0 0
        %2962 = vmatpush1.bf16.msra.mxu0 %v2548
        %2963 = vmatprep.subr.bf16.mxu0 0
        %2964 = vmatpush1.bf16.msra.mxu0 %v2549
        %2965 = vmatprep.subr.bf16.mxu0 0
        %2966 = vmatpush1.bf16.msra.mxu0 %v2550
        %2967 = vmatprep.mubr.bf16.mxu0 %v1661
        %2968 = vmatmul.mubr.bf16.gmra.mrb[0].mxu0 %v1660
        %v2969 = vpop.f32.mrb[0].mxu0
        %v2970 = vadd.f32 %v2930, %v2969
        %v2971 = vpop.f32.mrb[0].mxu0
        %v2972 = vpop.f32.mrb[0].mxu0
        %v2973 = vpop.f32.mrb[0].mxu0
        %2974 = vdwg.mxu0
        %2975 = vmatprep.subr.bf16.mxu0 0
        %2976 = vmatpush1.bf16.msra.mxu0 %v2551
        %2977 = vmatprep.subr.bf16.mxu0 0
        %2978 = vmatpush1.bf16.msra.mxu0 %v2552
        %2979 = vmatprep.subr.bf16.mxu0 0
        %2980 = vmatpush1.bf16.msra.mxu0 %v2553
        %2981 = vmatprep.subr.bf16.mxu0 0
        %2982 = vmatpush1.bf16.msra.mxu0 %v2554
        %2983 = vmatprep.subr.bf16.mxu0 0
        %2984 = vmatpush1.bf16.msra.mxu0 %v2555
        %2985 = vmatprep.subr.bf16.mxu0 0
        %2986 = vmatpush1.bf16.msra.mxu0 %v2556
        %2987 = vmatprep.subr.bf16.mxu0 0
        %2988 = vmatpush1.bf16.msra.mxu0 %v2557
        %2989 = vmatprep.subr.bf16.mxu0 0
        %2990 = vmatpush1.bf16.msra.mxu0 %v2558
        %2991 = vmatprep.subr.bf16.mxu0 0
        %2992 = vmatpush1.bf16.msra.mxu0 %v2559
        %2993 = vmatprep.subr.bf16.mxu0 0
        %2994 = vmatpush1.bf16.msra.mxu0 %v2560
        %2995 = vmatprep.subr.bf16.mxu0 0
        %2996 = vmatpush1.bf16.msra.mxu0 %v2561
        %2997 = vmatprep.subr.bf16.mxu0 0
        %2998 = vmatpush1.bf16.msra.mxu0 %v2562
        %2999 = vmatprep.subr.bf16.mxu0 0
        %3000 = vmatpush1.bf16.msra.mxu0 %v2563
        %3001 = vmatprep.subr.bf16.mxu0 0
        %3002 = vmatpush1.bf16.msra.mxu0 %v2564
        %3003 = vmatprep.subr.bf16.mxu0 0
        %3004 = vmatpush1.bf16.msra.mxu0 %v2565
        %3005 = vmatprep.subr.bf16.mxu0 0
        %3006 = vmatpush1.bf16.msra.mxu0 %v2566
        %3007 = vmatprep.mubr.bf16.mxu0 %v1663
        %3008 = vmatmul.mubr.bf16.gmra.mrb[0].mxu0 %v1662
        %v3009 = vpop.f32.mrb[0].mxu0
        %v3010 = vadd.f32 %v2970, %v3009
        %v3011 = vpop.f32.mrb[0].mxu0
        %v3012 = vpop.f32.mrb[0].mxu0
        %v3013 = vpop.f32.mrb[0].mxu0
        %3014 = vdwg.mxu0
        %vm3015 = vcmask 517120
        %3016 = vst.msk [vmem:[%s650] sm:$0x3] %vm3015, %v3010
        %s3017 = sand.u32 %s319, 1
        %s3018 = scalar_lea.sflag [#allocation4], %s3017
        %s3019 = sand.u32 %s319, 1
        %s3020 = smul.addr %s3019, 2
        %s3021 = scalar_lea.vmem [#allocation22], %s3020
        // Predicated region
        $region117: #{tpu_custom_call.1} parent=67 // pred_check
          %p3022 = pneg %p329
        $region118: #{tpu_custom_call.1} parent=67 // pred_check_branch
          %3024 = sbr.rel (%p3022) target = $region120
        $region119: #{tpu_custom_call.1} parent=67 // pred_region
          %s3026 = ssub.s32 32, 32
          %3027 = vsyncadd %s3018, %s3026
          %s3028 = smul.addr %s39, 32
          %s3029 = scalar_lea.hbm %s12, %s3028
          %s3031 = sshll.u32 %s3021, 4
          %s3032 = int_to_ptr.vmem [resolvable:$true] %s3031
          %3034 = dma.vmem_to_hbm [thread:$0]  %s3032, 32, %s3029, %s3018
        $region120: #{tpu_custom_call.1} parent=67 // pred_fallthru
          _
      $region68: #{tpu_custom_call.1} parent=5 // pred_fallthru
        _
      %p3035 = scmp.le.s32.totalorder 2, %s34
      // Predicated region
      $region121: #{tpu_custom_call.1} parent=5 // pred_check
        %p3036 = pneg %p3035
      $region122: #{tpu_custom_call.1} parent=5 // pred_check_branch
        %3038 = sbr.rel (%p3036) target = $region124
      $region123: #{tpu_custom_call.1} parent=5 // pred_region
        %s3039 = ssub.s32 %s34, 2
        // Predicated region
        $region125: #{tpu_custom_call.1} parent=123 // pred_check
          %p3040 = pneg %p335
        $region126: #{tpu_custom_call.1} parent=123 // pred_check_branch
          %3042 = sbr.rel (%p3040) target = $region128
        $region127: #{tpu_custom_call.1} parent=123 // pred_region
          %s3043 = sand.u32 %s320, 1
          %s3044 = scalar_lea.sflag [#allocation4], %s3043
          %s3045 = sand.u32 %s320, 1
          %s3046 = smul.addr %s3045, 2
          %s3047 = scalar_lea.vmem [#allocation22], %s3046
          %3048 = dma.done %s3044, 32
        $region128: #{tpu_custom_call.1} parent=123 // pred_fallthru
          _
      $region124: #{tpu_custom_call.1} parent=5 // pred_fallthru
        _
    $region6: #{tpu_custom_call.1} parent=1 // loop_footer
      %s38 = sadd.s32 1, %s34
    $region7: #{tpu_custom_call.1} parent=1 // loop_footer_branch
      %33 = sbr.rel target = $region3
    $region8: #{tpu_custom_call.1} parent=1 // loop_exit
      _
    %3049 = vsyncpa [#allocation3], 1
    %s3050 = scalar_lea.sflag [#allocation3], 1
    %3051 = vsyncpa %s3050, 1
    %3052 = vsyncpa [#allocation6], 1
    %s3053 = scalar_lea.sflag [#allocation6], 1
    %3054 = vsyncpa %s3053, 1
    %3055 = vsyncpa [#allocation9], 1
    %s3056 = scalar_lea.sflag [#allocation9], 1
    %3057 = vsyncpa %s3056, 1
    %3058 = vsyncpa [#allocation12], 1
    %3059 = vsyncpa [#allocation15], 1
    %3060 = vsyncpa [#allocation18], 1
    %3061 = vsyncpa [#allocation21], 1
    %3062 = vsyncpa [#allocation4], 1
    %s3063 = scalar_lea.sflag [#allocation4], 1
    %3064 = vsyncpa %s3063, 1

</llo_original>
